<compile_context>
chip_gen: v5e
topology: v5e:2x2
jax: 0.10.0
libtpu: 0.0.40
codegen_flags: <defaults>
</compile_context>

<pallas_src>
import functools

import jax
import jax.numpy as jnp
from jax.experimental import pallas as pl
from jax.experimental.pallas import tpu as pltpu


_STRIP = 128  # lanes per inner strip (bounds vreg live ranges; mx block width)


# ----------------------------------------------------------------------------
# Pallas kernel: one RK4 (3/8-rule) step of the coupled-CPG ODE, batch on lanes,
# inner strip loop over 128-lane sub-tiles.
# ----------------------------------------------------------------------------
def _cpg_rk4_kernel(env_ref, osc_ref, off_ref, c_ref, c2_ref, Mcpl_ref, Mvb_ref,
                    out_ref, mx_ref, *, dt, n_osc):
    n = n_osc
    tb = osc_ref.shape[1]
    n_strips = tb // _STRIP

    # Hoist all loop-invariant parameter loads / broadcasts out of the strip
    # loop (and hence out of the 4x-traced deriv()).
    Mcpl = Mcpl_ref[...]                                        # [2n, 2n]
    Mvb = Mvb_ref[...]                                          # [2n, dim_env]
    off_b = jnp.broadcast_to(off_ref[...], (2 * n, _STRIP))     # [2πv ; c²b/4]
    c_b = jnp.broadcast_to(c_ref[...], (n, _STRIP))             # c_i
    c2_b = jnp.broadcast_to(c2_ref[...], (n, _STRIP))           # c_i²/4
    one_third = 1.0 / 3.0

    def deriv(psi, r, rd, two_pi_v, cb_eff):
        sinp = jnp.sin(psi)
        cosp = jnp.cos(psi)
        # One fused MXU push per stage:
        #   p[:n] = A@(r·sinψ) - Bm@(r·cosψ) ;  p[n:] = Bm@(r·sinψ) + A@(r·cosψ)
        x = jnp.concatenate([r * sinp, r * cosp], axis=0)            # [2n, STRIP]
        p = jnp.dot(Mcpl, x, preferred_element_type=jnp.float32)     # [2n, STRIP]
        coupling = cosp * p[0:n, :] - sinp * p[n:2 * n, :]
        psi_dot = two_pi_v + coupling
        rd_dot = cb_eff - c2_b * r - c_b * rd
        return psi_dot, rd, rd_dot

    def strip_body(j, carry):
        m_psi, m_r, m_rd = carry
        lane0 = pl.multiple_of(j * _STRIP, _STRIP)
        env = env_ref[:, pl.ds(lane0, _STRIP)]                       # [dim_env, S]
        osc = osc_ref[:, pl.ds(lane0, _STRIP)]                       # [3n, S]
        psi0 = osc[0:n, :]
        r0 = osc[n:2 * n, :]
        rd0 = osc[2 * n:3 * n, :]

        # Fused env -> (2π·v_eff, c²/4·b_eff) modulation (env_dot = 0, so this
        # is constant over the RK4 step): one small matmul per strip.
        evb = off_b + jnp.dot(Mvb, env, preferred_element_type=jnp.float32)
        two_pi_v = evb[0:n, :]
        cb_eff = evb[n:2 * n, :]

        # torchdiffeq fixed-grid 'rk4' step (rk4_alt_step_func, 3/8 rule);
        # the ODE is autonomous so time arguments are irrelevant.
        y0 = (psi0, r0, rd0)
        k1 = deriv(*y0, two_pi_v, cb_eff)
        k2 = deriv(*(y + dt * k * one_third for y, k in zip(y0, k1)),
                   two_pi_v, cb_eff)
        k3 = deriv(*(y + dt * (b - a * one_third)
                     for y, a, b in zip(y0, k1, k2)), two_pi_v, cb_eff)
        k4 = deriv(*(y + dt * (a - b + c) for y, a, b, c in zip(y0, k1, k2, k3)),
                   two_pi_v, cb_eff)
        psi1, r1, rd1 = (y + dt * 0.125 * (a + 3.0 * (b + c) + d)
                         for y, a, b, c, d in zip(y0, k1, k2, k3, k4))

        # Per-section lane-dense slice stores; env rows are never rewritten
        # (the osc state aliases input<->output in HBM).
        out_ref[0:n, pl.ds(lane0, _STRIP)] = psi1
        out_ref[n:2 * n, pl.ds(lane0, _STRIP)] = r1
        out_ref[2 * n:3 * n, pl.ds(lane0, _STRIP)] = rd1

        # Per-lane running maxima (sublane reduce); host finishes the reduction.
        m_psi = jnp.maximum(m_psi, jnp.max(psi1, axis=0, keepdims=True))
        m_r = jnp.maximum(m_r, jnp.max(r1, axis=0, keepdims=True))
        m_rd = jnp.maximum(m_rd, jnp.max(rd1, axis=0, keepdims=True))
        return m_psi, m_r, m_rd

    neg_inf = jnp.full((1, _STRIP), -jnp.inf, dtype=jnp.float32)
    m_psi, m_r, m_rd = jax.lax.fori_loop(0, n_strips, strip_body,
                                         (neg_inf, neg_inf, neg_inf))

    # mx rows 0/1/2 = per-lane maxima of psi / r / rd for this block.
    row = jax.lax.broadcasted_iota(jnp.int32, (8, _STRIP), 0)
    mx_ref[...] = jnp.where(
        row == 0, jnp.broadcast_to(m_psi, (8, _STRIP)),
        jnp.where(row == 1, jnp.broadcast_to(m_r, (8, _STRIP)),
                  jnp.broadcast_to(m_rd, (8, _STRIP))))


# ----------------------------------------------------------------------------
# Host-side parameter packing (fused / pre-scaled weights).
# ----------------------------------------------------------------------------
def build_cpg_params(v, b, c, w, phi, Wv, Wb):
    """v, b, c: (n,); w, phi: (n, n); Wv, Wb: (dim_env, n)."""
    v = jnp.reshape(v, (-1,)).astype(jnp.float32)
    b = jnp.reshape(b, (-1,)).astype(jnp.float32)
    c = jnp.reshape(c, (-1,)).astype(jnp.float32)
    n = v.shape[0]
    A = w * jnp.cos(phi)
    Bm = w * jnp.sin(phi)
    Mcpl = jnp.block([[A, -Bm], [Bm, A]]).astype(jnp.float32)        # (2n, 2n)
    c2 = 0.25 * c * c
    off = jnp.concatenate([2.0 * jnp.pi * v, c2 * b]).reshape(2 * n, 1)
    Mvb = jnp.concatenate([2.0 * jnp.pi * Wv.T, c2[:, None] * Wb.T],
                          axis=0).astype(jnp.float32)                # (2n, dim_env)
    return dict(off=off, c=c.reshape(n, 1), c2=c2.reshape(n, 1),
                Mcpl=Mcpl, Mvb=Mvb)


# ----------------------------------------------------------------------------
# Tiling choice + feature-major state packing (boundary-only layout plumbing).
# ----------------------------------------------------------------------------
def _choose_tile(batch, block_b):
    assert block_b % _STRIP == 0 and block_b >= _STRIP
    b128 = pl.cdiv(batch, _STRIP) * _STRIP
    tb = min(block_b, b128)
    if b128 >= 2 * _STRIP:
        # Ensure >= 2 grid blocks so ("parallel",) can shard across v7x's
        # two TensorCores (harmless on v5e / v6e).
        tb = min(tb, max(_STRIP, (b128 // 2 // _STRIP) * _STRIP))
    b_pad = pl.cdiv(batch, tb) * tb
    return tb, b_pad


def pack_cpg_state(states_bd, *, dim_env, b_pad):
    """[B, D] (any float dtype) -> feature-major (env [dim_env, b_pad] f32,
    osc [3n, b_pad] f32). Padded lanes are edge-replicated so the in-kernel
    max trackers stay exact. Call once at the API boundary; step feature-major."""
    s = jnp.asarray(states_bd, dtype=jnp.float32)
    batch = s.shape[0]
    st_t = s.T
    if b_pad > batch:
        st_t = jnp.pad(st_t, ((0, 0), (0, b_pad - batch)), mode="edge")
    return st_t[:dim_env, :], st_t[dim_env:, :]


def unpack_cpg_state(env_fm, osc_fm, batch):
    """Feature-major (env, osc) -> [B, D] f32 (API boundary only)."""
    return jnp.concatenate([env_fm, osc_fm], axis=0)[:, :batch].T


# ----------------------------------------------------------------------------
# Hot path: one CPG step on feature-major state (no transposes, osc aliased).
# ----------------------------------------------------------------------------
def cpg_step_fm(env_fm, osc_fm, params, *, dt, tb):
    """env_fm: [dim_env, b_pad] f32 (read-only, env_dot = 0)
    osc_fm: [3*n_osc, b_pad] f32 (donated; aliased to the output)
    returns (osc_fm_next [3n, b_pad] f32, (max_psi, max_r, max_rd))."""
    dim_env, b_pad = env_fm.shape
    d_osc = osc_fm.shape[0]
    assert d_osc % 3 == 0 and osc_fm.shape[1] == b_pad
    assert osc_fm.dtype == jnp.float32 and env_fm.dtype == jnp.float32
    assert b_pad % tb == 0 and tb % _STRIP == 0
    n_osc = d_osc // 3
    n2 = 2 * n_osc
    num_blocks = b_pad // tb

    kernel = functools.partial(_cpg_rk4_kernel, dt=float(dt), n_osc=n_osc)
    grid_spec = pltpu.PrefetchScalarGridSpec(
        num_scalar_prefetch=0,
        grid=(num_blocks,),
        in_specs=[
            pl.BlockSpec((dim_env, tb), lambda i: (0, i)),    # env tile (read-only)
            pl.BlockSpec((d_osc, tb), lambda i: (0, i)),      # osc tile (aliased)
            pl.BlockSpec((n2, 1), lambda i: (0, 0)),          # off = [2πv ; c²b/4]
            pl.BlockSpec((n_osc, 1), lambda i: (0, 0)),       # c
            pl.BlockSpec((n_osc, 1), lambda i: (0, 0)),       # c²/4
            pl.BlockSpec((n2, n2), lambda i: (0, 0)),         # fused coupling matrix
            pl.BlockSpec((n2, dim_env), lambda i: (0, 0)),    # fused env weights
        ],
        out_specs=[
            pl.BlockSpec((d_osc, tb), lambda i: (0, i)),      # next osc tile
            pl.BlockSpec((8, _STRIP), lambda i: (0, i)),      # per-block lane maxima
        ],
    )
    osc_next, mx = pl.pallas_call(
        kernel,
        out_shape=(jax.ShapeDtypeStruct((d_osc, b_pad), jnp.float32),
                   jax.ShapeDtypeStruct((8, _STRIP * num_blocks), jnp.float32)),
        grid_spec=grid_spec,
        input_output_aliases={1: 0},                          # osc in -> osc out
        compiler_params=pltpu.CompilerParams(
            dimension_semantics=("parallel",)),
    )(env_fm, osc_fm, params["off"], params["c"], params["c2"],
      params["Mcpl"], params["Mvb"])

    max_psi = jnp.max(mx[0, :])
    max_r = jnp.max(mx[1, :])
    max_rd = jnp.max(mx[2, :])
    return osc_next, (max_psi, max_r, max_rd)


# ----------------------------------------------------------------------------
# [B, D] API-boundary wrapper (semantic equivalent of CPGActor.forward,
# use_normalized_cpg_state=False). For repeated stepping, keep the state
# feature-major and call cpg_step_fm directly (no per-step transposes).
# ----------------------------------------------------------------------------
def cpg_actor_forward(states, params, *, dt, dim_env, n_osc, block_b=4096):
    B, D = states.shape
    assert D == dim_env + 3 * n_osc and dim_env >= 1 and n_osc >= 1
    tb, b_pad = _choose_tile(B, block_b)
    env_fm, osc_fm = pack_cpg_state(states, dim_env=dim_env, b_pad=b_pad)
    osc_next, maxes = cpg_step_fm(env_fm, osc_fm, params, dt=dt, tb=tb)
    next_state = unpack_cpg_state(env_fm, osc_next, B)
    return next_state, maxes


# ----------------------------------------------------------------------------
# Pure-JAX reference (pairwise-sin coupling, no matmul decomposition).
# ----------------------------------------------------------------------------
def _reference_forward(states, v, b, c, w, phi, Wv, Wb, *, dt, dim_env, n_osc):
    s = states.astype(jnp.float32)
    env = s[:, :dim_env]
    psi0 = s[:, dim_env:dim_env + n_osc]
    r0 = s[:, dim_env + n_osc:dim_env + 2 * n_osc]
    rd0 = s[:, dim_env + 2 * n_osc:dim_env + 3 * n_osc]
    v_eff = v + env @ Wv
    b_eff = b + env @ Wb

    def deriv(psi, r, rd):
        diff = psi[:, None, :] - psi[:, :, None] - phi[None, :, :]   # [B, i, j]
        coupling = jnp.sum(w[None] * r[:, None, :] * jnp.sin(diff), axis=-1)
        psi_dot = 2.0 * jnp.pi * v_eff + coupling
        return psi_dot, rd, c * (c * 0.25 * (b_eff - r) - rd)

    y0 = (psi0, r0, rd0)
    one_third = 1.0 / 3.0
    k1 = deriv(*y0)
    k2 = deriv(*(y + dt * k * one_third for y, k in zip(y0, k1)))
    k3 = deriv(*(y + dt * (k2_ - k1_ * one_third)
                 for y, k1_, k2_ in zip(y0, k1, k2)))
    k4 = deriv(*(y + dt * (k1_ - k2_ + k3_)
                 for y, k1_, k2_, k3_ in zip(y0, k1, k2, k3)))
    psi1, r1, rd1 = (y + dt * 0.125 * (a + 3.0 * (bb + cc) + dd)
                     for y, a, bb, cc, dd in zip(y0, k1, k2, k3, k4))
    return jnp.concatenate([env, psi1, r1, rd1], axis=1)


if __name__ == "__main__":
    # B chosen so that padding, multiple grid blocks AND multiple inner strips
    # are all exercised (B=520 -> tb=256, b_pad=768, 3 blocks, 2 strips/block).
    B, dim_env, n_osc = 520, 8, 8
    dt = 0.01
    D = dim_env + 3 * n_osc                # 32

    key = jax.random.PRNGKey(0)
    ks = jax.random.split(key, 8)
    states = jax.random.normal(ks[0], (B, D), jnp.float32)
    v = jax.random.uniform(ks[1], (n_osc,), jnp.float32, 0.5, 2.0)
    b = jax.random.uniform(ks[2], (n_osc,), jnp.float32, 0.2, 1.0)
    c = jnp.full((n_osc,), 20.0, jnp.float32)
    w = jax.random.uniform(ks[3], (n_osc, n_osc), jnp.float32, 0.0, 1.0)
    phi = jax.random.uniform(ks[4], (n_osc, n_osc), jnp.float32, -jnp.pi, jnp.pi)
    Wv = 0.1 * jax.random.normal(ks[5], (dim_env, n_osc), jnp.float32)
    Wb = 0.1 * jax.random.normal(ks[6], (dim_env, n_osc), jnp.float32)

    params = build_cpg_params(v, b, c, w, phi, Wv, Wb)

    # --- single forward step through the [B, D] boundary API -----------------
    fwd = jax.jit(functools.partial(cpg_actor_forward, dt=dt,
                                    dim_env=dim_env, n_osc=n_osc))
    out, (max_psi, max_r, max_rd) = fwd(states, params)
    out = jax.block_until_ready(out)

    ref = _reference_forward(states, v, b, c, w, phi, Wv, Wb,
                             dt=dt, dim_env=dim_env, n_osc=n_osc)
    ref = jax.block_until_ready(ref)

    assert out.shape == (B, D) and out.dtype == jnp.float32
    assert jnp.allclose(out, ref, atol=2e-3, rtol=2e-3), \
        f"mismatch: max abs err {jnp.max(jnp.abs(out - ref))}"

    ref_mpsi = jnp.max(ref[:, dim_env:dim_env + n_osc])
    ref_mr = jnp.max(ref[:, dim_env + n_osc:dim_env + 2 * n_osc])
    ref_mrd = jnp.max(ref[:, dim_env + 2 * n_osc:])
    assert jnp.allclose(max_psi, ref_mpsi, atol=2e-3), (max_psi, ref_mpsi)
    assert jnp.allclose(max_r, ref_mr, atol=2e-3), (max_r, ref_mr)
    assert jnp.allclose(max_rd, ref_mrd, atol=2e-3), (max_rd, ref_mrd)

    # --- multi-step feature-major rollout (the intended transpose-free path) -
    n_steps = 3

    @jax.jit
    def rollout(states_bd, params):
        tb, b_pad = _choose_tile(states_bd.shape[0], 4096)
        env_fm, osc_fm = pack_cpg_state(states_bd, dim_env=dim_env, b_pad=b_pad)
        for _ in range(n_steps):
            osc_fm, _ = cpg_step_fm(env_fm, osc_fm, params, dt=dt, tb=tb)
        return unpack_cpg_state(env_fm, osc_fm, states_bd.shape[0])

    out_roll = jax.block_until_ready(rollout(states, params))
    ref_roll = states
    for _ in range(n_steps):
        ref_roll = _reference_forward(ref_roll, v, b, c, w, phi, Wv, Wb,
                                      dt=dt, dim_env=dim_env, n_osc=n_osc)
    ref_roll = jax.block_until_ready(ref_roll)
    assert jnp.allclose(out_roll, ref_roll, atol=5e-3, rtol=5e-3), \
        f"rollout mismatch: max abs err {jnp.max(jnp.abs(out_roll - ref_roll))}"

    print("KERNEL_OK")
</pallas_src>

<mosaic_0001>
module attributes {stable_mosaic.version = 11 : i64} {
  func.func @_cpg_rk4_kernel(%arg0: i32, %arg1: memref<8x256xf32, #tpu.memory_space<vmem>>, %arg2: memref<24x256xf32, #tpu.memory_space<vmem>>, %arg3: memref<16x1xf32, #tpu.memory_space<vmem>>, %arg4: memref<8x1xf32, #tpu.memory_space<vmem>>, %arg5: memref<8x1xf32, #tpu.memory_space<vmem>>, %arg6: memref<16x16xf32, #tpu.memory_space<vmem>>, %arg7: memref<16x8xf32, #tpu.memory_space<vmem>>, %arg8: memref<24x256xf32, #tpu.memory_space<vmem>>, %arg9: memref<8x128xf32, #tpu.memory_space<vmem>>) attributes {dimension_semantics = [#tpu.dimension_semantics<parallel>], iteration_bounds = array<i64: 3>, scalar_prefetch = 0 : i64, scratch_operands = 0 : i64, tpu.core_type = #tpu.core_type<tc>, window_params = [{transform_indices = @transform_0, window_bounds = array<i64: 8, 256>}, {transform_indices = @transform_1, window_bounds = array<i64: 24, 256>}, {pipeline_mode = #tpu.pipeline_mode<synchronous>, transform_indices = @transform_2, window_bounds = array<i64: 16, 1>}, {pipeline_mode = #tpu.pipeline_mode<synchronous>, transform_indices = @transform_3, window_bounds = array<i64: 8, 1>}, {pipeline_mode = #tpu.pipeline_mode<synchronous>, transform_indices = @transform_4, window_bounds = array<i64: 8, 1>}, {pipeline_mode = #tpu.pipeline_mode<synchronous>, transform_indices = @transform_5, window_bounds = array<i64: 16, 16>}, {pipeline_mode = #tpu.pipeline_mode<synchronous>, transform_indices = @transform_6, window_bounds = array<i64: 16, 8>}, {transform_indices = @transform_7, window_bounds = array<i64: 24, 256>}, {transform_indices = @transform_8, window_bounds = array<i64: 8, 128>}]} {
    %c0 = arith.constant 0 : index
    %c0_0 = arith.constant 0 : index
    %0 = vector.load %arg6[%c0, %c0_0] : memref<16x16xf32, #tpu.memory_space<vmem>>, vector<16x16xf32>
    %c0_1 = arith.constant 0 : index
    %c0_2 = arith.constant 0 : index
    %1 = vector.load %arg7[%c0_1, %c0_2] : memref<16x8xf32, #tpu.memory_space<vmem>>, vector<16x8xf32>
    %c0_3 = arith.constant 0 : index
    %c0_4 = arith.constant 0 : index
    %2 = vector.load %arg3[%c0_3, %c0_4] : memref<16x1xf32, #tpu.memory_space<vmem>>, vector<16x1xf32>
    %3 = vector.shape_cast %2 : vector<16x1xf32> to vector<16x1xf32>
    %4 = vector.broadcast %3 : vector<16x1xf32> to vector<16x128xf32>
    %c0_5 = arith.constant 0 : index
    %c0_6 = arith.constant 0 : index
    %5 = vector.load %arg4[%c0_5, %c0_6] : memref<8x1xf32, #tpu.memory_space<vmem>>, vector<8x1xf32>
    %6 = vector.shape_cast %5 : vector<8x1xf32> to vector<8x1xf32>
    %7 = vector.broadcast %6 : vector<8x1xf32> to vector<8x128xf32>
    %c0_7 = arith.constant 0 : index
    %c0_8 = arith.constant 0 : index
    %8 = vector.load %arg5[%c0_7, %c0_8] : memref<8x1xf32, #tpu.memory_space<vmem>>, vector<8x1xf32>
    %9 = vector.shape_cast %8 : vector<8x1xf32> to vector<8x1xf32>
    %10 = vector.broadcast %9 : vector<8x1xf32> to vector<8x128xf32>
    %cst = arith.constant 0xFF800000 : f32
    %11 = vector.broadcast %cst : f32 to vector<1x128xf32>
    %c0_i32 = arith.constant 0 : i32
    %c2_i32 = arith.constant 2 : i32
    %12 = arith.addi %c0_i32, %c2_i32 : i32
    %c1_i32 = arith.constant 1 : i32
    %13:3 = scf.for %arg10 = %c0_i32 to %12 step %c1_i32 iter_args(%arg11 = %11, %arg12 = %11, %arg13 = %11) -> (vector<1x128xf32>, vector<1x128xf32>, vector<1x128xf32>)  : i32 {
      %c128_i32 = arith.constant 128 : i32
      %28 = arith.muli %arg10, %c128_i32 : i32
      %29 = tpu.assume_multiple %28, 128 : i32
      %c0_14 = arith.constant 0 : index
      %30 = arith.index_cast %29 : i32 to index
      %31 = vector.load %arg1[%c0_14, %30] : memref<8x256xf32, #tpu.memory_space<vmem>>, vector<8x128xf32>
      %c0_15 = arith.constant 0 : index
      %32 = arith.index_cast %29 : i32 to index
      %33 = vector.load %arg2[%c0_15, %32] : memref<24x256xf32, #tpu.memory_space<vmem>>, vector<24x128xf32>
      %34 = vector.extract_strided_slice %33 {offsets = [0, 0], sizes = [8, 128], strides = [1, 1]} : vector<24x128xf32> to vector<8x128xf32>
      %35 = vector.extract_strided_slice %33 {offsets = [8, 0], sizes = [8, 128], strides = [1, 1]} : vector<24x128xf32> to vector<8x128xf32>
      %36 = vector.extract_strided_slice %33 {offsets = [16, 0], sizes = [8, 128], strides = [1, 1]} : vector<24x128xf32> to vector<8x128xf32>
      %cst_16 = arith.constant dense<0.000000e+00> : vector<16x128xf32>
      %37 = tpu.matmul %1, %31, %cst_16 {dimension_numbers = #tpu.dot_dimension_numbers<[1], [0], [0], [1], [0, 0, 1, 1], [], []>} : vector<16x8xf32>, vector<8x128xf32>, vector<16x128xf32> -> vector<16x128xf32>
      %38 = arith.addf %4, %37 : vector<16x128xf32>
      %39 = vector.extract_strided_slice %38 {offsets = [0, 0], sizes = [8, 128], strides = [1, 1]} : vector<16x128xf32> to vector<8x128xf32>
      %40 = vector.extract_strided_slice %38 {offsets = [8, 0], sizes = [8, 128], strides = [1, 1]} : vector<16x128xf32> to vector<8x128xf32>
      %41 = math.sin %34 : vector<8x128xf32>
      %42 = math.cos %34 : vector<8x128xf32>
      %43 = arith.mulf %35, %41 : vector<8x128xf32>
      %44 = arith.mulf %35, %42 : vector<8x128xf32>
      %45 = tpu.concatenate %43, %44 in 0 : vector<8x128xf32>, vector<8x128xf32> -> vector<16x128xf32>
      %cst_17 = arith.constant dense<0.000000e+00> : vector<16x128xf32>
      %46 = tpu.matmul %0, %45, %cst_17 {dimension_numbers = #tpu.dot_dimension_numbers<[1], [0], [0], [1], [0, 0, 1, 1], [], []>} : vector<16x16xf32>, vector<16x128xf32>, vector<16x128xf32> -> vector<16x128xf32>
      %47 = vector.extract_strided_slice %46 {offsets = [0, 0], sizes = [8, 128], strides = [1, 1]} : vector<16x128xf32> to vector<8x128xf32>
      %48 = arith.mulf %42, %47 : vector<8x128xf32>
      %49 = vector.extract_strided_slice %46 {offsets = [8, 0], sizes = [8, 128], strides = [1, 1]} : vector<16x128xf32> to vector<8x128xf32>
      %50 = arith.mulf %41, %49 : vector<8x128xf32>
      %51 = arith.subf %48, %50 : vector<8x128xf32>
      %52 = arith.addf %39, %51 : vector<8x128xf32>
      %53 = arith.mulf %10, %35 : vector<8x128xf32>
      %54 = arith.subf %40, %53 : vector<8x128xf32>
      %55 = arith.mulf %7, %36 : vector<8x128xf32>
      %56 = arith.subf %54, %55 : vector<8x128xf32>
      %cst_18 = arith.constant 0.00999999977 : f32
      %57 = vector.broadcast %cst_18 : f32 to vector<8x128xf32>
      %58 = arith.mulf %57, %52 : vector<8x128xf32>
      %cst_19 = arith.constant 0.333333343 : f32
      %59 = vector.broadcast %cst_19 : f32 to vector<8x128xf32>
      %60 = arith.mulf %58, %59 : vector<8x128xf32>
      %61 = arith.addf %34, %60 : vector<8x128xf32>
      %cst_20 = arith.constant 0.00999999977 : f32
      %62 = vector.broadcast %cst_20 : f32 to vector<8x128xf32>
      %63 = arith.mulf %62, %36 : vector<8x128xf32>
      %cst_21 = arith.constant 0.333333343 : f32
      %64 = vector.broadcast %cst_21 : f32 to vector<8x128xf32>
      %65 = arith.mulf %63, %64 : vector<8x128xf32>
      %66 = arith.addf %35, %65 : vector<8x128xf32>
      %cst_22 = arith.constant 0.00999999977 : f32
      %67 = vector.broadcast %cst_22 : f32 to vector<8x128xf32>
      %68 = arith.mulf %67, %56 : vector<8x128xf32>
      %cst_23 = arith.constant 0.333333343 : f32
      %69 = vector.broadcast %cst_23 : f32 to vector<8x128xf32>
      %70 = arith.mulf %68, %69 : vector<8x128xf32>
      %71 = arith.addf %36, %70 : vector<8x128xf32>
      %72 = math.sin %61 : vector<8x128xf32>
      %73 = math.cos %61 : vector<8x128xf32>
      %74 = arith.mulf %66, %72 : vector<8x128xf32>
      %75 = arith.mulf %66, %73 : vector<8x128xf32>
      %76 = tpu.concatenate %74, %75 in 0 : vector<8x128xf32>, vector<8x128xf32> -> vector<16x128xf32>
      %cst_24 = arith.constant dense<0.000000e+00> : vector<16x128xf32>
      %77 = tpu.matmul %0, %76, %cst_24 {dimension_numbers = #tpu.dot_dimension_numbers<[1], [0], [0], [1], [0, 0, 1, 1], [], []>} : vector<16x16xf32>, vector<16x128xf32>, vector<16x128xf32> -> vector<16x128xf32>
      %78 = vector.extract_strided_slice %77 {offsets = [0, 0], sizes = [8, 128], strides = [1, 1]} : vector<16x128xf32> to vector<8x128xf32>
      %79 = arith.mulf %73, %78 : vector<8x128xf32>
      %80 = vector.extract_strided_slice %77 {offsets = [8, 0], sizes = [8, 128], strides = [1, 1]} : vector<16x128xf32> to vector<8x128xf32>
      %81 = arith.mulf %72, %80 : vector<8x128xf32>
      %82 = arith.subf %79, %81 : vector<8x128xf32>
      %83 = arith.addf %39, %82 : vector<8x128xf32>
      %84 = arith.mulf %10, %66 : vector<8x128xf32>
      %85 = arith.subf %40, %84 : vector<8x128xf32>
      %86 = arith.mulf %7, %71 : vector<8x128xf32>
      %87 = arith.subf %85, %86 : vector<8x128xf32>
      %cst_25 = arith.constant 0.333333343 : f32
      %88 = vector.broadcast %cst_25 : f32 to vector<8x128xf32>
      %89 = arith.mulf %52, %88 : vector<8x128xf32>
      %90 = arith.subf %83, %89 : vector<8x128xf32>
      %cst_26 = arith.constant 0.00999999977 : f32
      %91 = vector.broadcast %cst_26 : f32 to vector<8x128xf32>
      %92 = arith.mulf %91, %90 : vector<8x128xf32>
      %93 = arith.addf %34, %92 : vector<8x128xf32>
      %cst_27 = arith.constant 0.333333343 : f32
      %94 = vector.broadcast %cst_27 : f32 to vector<8x128xf32>
      %95 = arith.mulf %36, %94 : vector<8x128xf32>
      %96 = arith.subf %71, %95 : vector<8x128xf32>
      %cst_28 = arith.constant 0.00999999977 : f32
      %97 = vector.broadcast %cst_28 : f32 to vector<8x128xf32>
      %98 = arith.mulf %97, %96 : vector<8x128xf32>
      %99 = arith.addf %35, %98 : vector<8x128xf32>
      %cst_29 = arith.constant 0.333333343 : f32
      %100 = vector.broadcast %cst_29 : f32 to vector<8x128xf32>
      %101 = arith.mulf %56, %100 : vector<8x128xf32>
      %102 = arith.subf %87, %101 : vector<8x128xf32>
      %cst_30 = arith.constant 0.00999999977 : f32
      %103 = vector.broadcast %cst_30 : f32 to vector<8x128xf32>
      %104 = arith.mulf %103, %102 : vector<8x128xf32>
      %105 = arith.addf %36, %104 : vector<8x128xf32>
      %106 = math.sin %93 : vector<8x128xf32>
      %107 = math.cos %93 : vector<8x128xf32>
      %108 = arith.mulf %99, %106 : vector<8x128xf32>
      %109 = arith.mulf %99, %107 : vector<8x128xf32>
      %110 = tpu.concatenate %108, %109 in 0 : vector<8x128xf32>, vector<8x128xf32> -> vector<16x128xf32>
      %cst_31 = arith.constant dense<0.000000e+00> : vector<16x128xf32>
      %111 = tpu.matmul %0, %110, %cst_31 {dimension_numbers = #tpu.dot_dimension_numbers<[1], [0], [0], [1], [0, 0, 1, 1], [], []>} : vector<16x16xf32>, vector<16x128xf32>, vector<16x128xf32> -> vector<16x128xf32>
      %112 = vector.extract_strided_slice %111 {offsets = [0, 0], sizes = [8, 128], strides = [1, 1]} : vector<16x128xf32> to vector<8x128xf32>
      %113 = arith.mulf %107, %112 : vector<8x128xf32>
      %114 = vector.extract_strided_slice %111 {offsets = [8, 0], sizes = [8, 128], strides = [1, 1]} : vector<16x128xf32> to vector<8x128xf32>
      %115 = arith.mulf %106, %114 : vector<8x128xf32>
      %116 = arith.subf %113, %115 : vector<8x128xf32>
      %117 = arith.addf %39, %116 : vector<8x128xf32>
      %118 = arith.mulf %10, %99 : vector<8x128xf32>
      %119 = arith.subf %40, %118 : vector<8x128xf32>
      %120 = arith.mulf %7, %105 : vector<8x128xf32>
      %121 = arith.subf %119, %120 : vector<8x128xf32>
      %122 = arith.subf %52, %83 : vector<8x128xf32>
      %123 = arith.addf %122, %117 : vector<8x128xf32>
      %cst_32 = arith.constant 0.00999999977 : f32
      %124 = vector.broadcast %cst_32 : f32 to vector<8x128xf32>
      %125 = arith.mulf %124, %123 : vector<8x128xf32>
      %126 = arith.addf %34, %125 : vector<8x128xf32>
      %127 = arith.subf %36, %71 : vector<8x128xf32>
      %128 = arith.addf %127, %105 : vector<8x128xf32>
      %cst_33 = arith.constant 0.00999999977 : f32
      %129 = vector.broadcast %cst_33 : f32 to vector<8x128xf32>
      %130 = arith.mulf %129, %128 : vector<8x128xf32>
      %131 = arith.addf %35, %130 : vector<8x128xf32>
      %132 = arith.subf %56, %87 : vector<8x128xf32>
      %133 = arith.addf %132, %121 : vector<8x128xf32>
      %cst_34 = arith.constant 0.00999999977 : f32
      %134 = vector.broadcast %cst_34 : f32 to vector<8x128xf32>
      %135 = arith.mulf %134, %133 : vector<8x128xf32>
      %136 = arith.addf %36, %135 : vector<8x128xf32>
      %137 = math.sin %126 : vector<8x128xf32>
      %138 = math.cos %126 : vector<8x128xf32>
      %139 = arith.mulf %131, %137 : vector<8x128xf32>
      %140 = arith.mulf %131, %138 : vector<8x128xf32>
      %141 = tpu.concatenate %139, %140 in 0 : vector<8x128xf32>, vector<8x128xf32> -> vector<16x128xf32>
      %cst_35 = arith.constant dense<0.000000e+00> : vector<16x128xf32>
      %142 = tpu.matmul %0, %141, %cst_35 {dimension_numbers = #tpu.dot_dimension_numbers<[1], [0], [0], [1], [0, 0, 1, 1], [], []>} : vector<16x16xf32>, vector<16x128xf32>, vector<16x128xf32> -> vector<16x128xf32>
      %143 = vector.extract_strided_slice %142 {offsets = [0, 0], sizes = [8, 128], strides = [1, 1]} : vector<16x128xf32> to vector<8x128xf32>
      %144 = arith.mulf %138, %143 : vector<8x128xf32>
      %145 = vector.extract_strided_slice %142 {offsets = [8, 0], sizes = [8, 128], strides = [1, 1]} : vector<16x128xf32> to vector<8x128xf32>
      %146 = arith.mulf %137, %145 : vector<8x128xf32>
      %147 = arith.subf %144, %146 : vector<8x128xf32>
      %148 = arith.addf %39, %147 : vector<8x128xf32>
      %149 = arith.mulf %10, %131 : vector<8x128xf32>
      %150 = arith.subf %40, %149 : vector<8x128xf32>
      %151 = arith.mulf %7, %136 : vector<8x128xf32>
      %152 = arith.subf %150, %151 : vector<8x128xf32>
      %153 = arith.addf %83, %117 : vector<8x128xf32>
      %cst_36 = arith.constant 3.000000e+00 : f32
      %154 = vector.broadcast %cst_36 : f32 to vector<8x128xf32>
      %155 = arith.mulf %154, %153 : vector<8x128xf32>
      %156 = arith.addf %52, %155 : vector<8x128xf32>
      %157 = arith.addf %156, %148 : vector<8x128xf32>
      %cst_37 = arith.constant 1.250000e-03 : f32
      %158 = vector.broadcast %cst_37 : f32 to vector<8x128xf32>
      %159 = arith.mulf %158, %157 : vector<8x128xf32>
      %160 = arith.addf %34, %159 : vector<8x128xf32>
      %161 = arith.addf %71, %105 : vector<8x128xf32>
      %cst_38 = arith.constant 3.000000e+00 : f32
      %162 = vector.broadcast %cst_38 : f32 to vector<8x128xf32>
      %163 = arith.mulf %162, %161 : vector<8x128xf32>
      %164 = arith.addf %36, %163 : vector<8x128xf32>
      %165 = arith.addf %164, %136 : vector<8x128xf32>
      %cst_39 = arith.constant 1.250000e-03 : f32
      %166 = vector.broadcast %cst_39 : f32 to vector<8x128xf32>
      %167 = arith.mulf %166, %165 : vector<8x128xf32>
      %168 = arith.addf %35, %167 : vector<8x128xf32>
      %169 = arith.addf %87, %121 : vector<8x128xf32>
      %cst_40 = arith.constant 3.000000e+00 : f32
      %170 = vector.broadcast %cst_40 : f32 to vector<8x128xf32>
      %171 = arith.mulf %170, %169 : vector<8x128xf32>
      %172 = arith.addf %56, %171 : vector<8x128xf32>
      %173 = arith.addf %172, %152 : vector<8x128xf32>
      %cst_41 = arith.constant 1.250000e-03 : f32
      %174 = vector.broadcast %cst_41 : f32 to vector<8x128xf32>
      %175 = arith.mulf %174, %173 : vector<8x128xf32>
      %176 = arith.addf %36, %175 : vector<8x128xf32>
      %c0_42 = arith.constant 0 : index
      %177 = arith.index_cast %29 : i32 to index
      %178 = vector.load %arg8[%c0_42, %177] : memref<24x256xf32, #tpu.memory_space<vmem>>, vector<8x128xf32>
      tpu.vector_store %arg8[%c0_42, %177], %160 {strides = array<i32>} : memref<24x256xf32, #tpu.memory_space<vmem>>, vector<8x128xf32>,
      %c8 = arith.constant 8 : index
      %179 = arith.index_cast %29 : i32 to index
      %180 = vector.load %arg8[%c8, %179] : memref<24x256xf32, #tpu.memory_space<vmem>>, vector<8x128xf32>
      tpu.vector_store %arg8[%c8, %179], %168 {strides = array<i32>} : memref<24x256xf32, #tpu.memory_space<vmem>>, vector<8x128xf32>,
      %c16 = arith.constant 16 : index
      %181 = arith.index_cast %29 : i32 to index
      %182 = vector.load %arg8[%c16, %181] : memref<24x256xf32, #tpu.memory_space<vmem>>, vector<8x128xf32>
      tpu.vector_store %arg8[%c16, %181], %176 {strides = array<i32>} : memref<24x256xf32, #tpu.memory_space<vmem>>, vector<8x128xf32>,
      %cst_43 = arith.constant dense<0xFF800000> : vector<128xf32>
      %183 = vector.multi_reduction <maximumf>, %160, %cst_43 [0] : vector<8x128xf32> to vector<128xf32>
      %184 = vector.shape_cast %183 : vector<128xf32> to vector<1x128xf32>
      %185 = arith.maximumf %arg11, %184 : vector<1x128xf32>
      %cst_44 = arith.constant dense<0xFF800000> : vector<128xf32>
      %186 = vector.multi_reduction <maximumf>, %168, %cst_44 [0] : vector<8x128xf32> to vector<128xf32>
      %187 = vector.shape_cast %186 : vector<128xf32> to vector<1x128xf32>
      %188 = arith.maximumf %arg12, %187 : vector<1x128xf32>
      %cst_45 = arith.constant dense<0xFF800000> : vector<128xf32>
      %189 = vector.multi_reduction <maximumf>, %176, %cst_45 [0] : vector<8x128xf32> to vector<128xf32>
      %190 = vector.shape_cast %189 : vector<128xf32> to vector<1x128xf32>
      %191 = arith.maximumf %arg13, %190 : vector<1x128xf32>
      scf.yield %185, %188, %191 : vector<1x128xf32>, vector<1x128xf32>, vector<1x128xf32>
    }
    %c2_i32_9 = arith.constant 2 : i32
    %14 = tpu.iota {dimensions = array<i32: 0>} : vector<8x128xi32>
    %c0_i32_10 = arith.constant 0 : i32
    %15 = vector.broadcast %c0_i32_10 : i32 to vector<8x128xi32>
    %16 = arith.cmpi eq, %14, %15 : vector<8x128xi32>
    %17 = vector.shape_cast %13#0 : vector<1x128xf32> to vector<1x128xf32>
    %18 = vector.broadcast %17 : vector<1x128xf32> to vector<8x128xf32>
    %c1_i32_11 = arith.constant 1 : i32
    %19 = vector.broadcast %c1_i32_11 : i32 to vector<8x128xi32>
    %20 = arith.cmpi eq, %14, %19 : vector<8x128xi32>
    %21 = vector.shape_cast %13#1 : vector<1x128xf32> to vector<1x128xf32>
    %22 = vector.broadcast %21 : vector<1x128xf32> to vector<8x128xf32>
    %23 = vector.shape_cast %13#2 : vector<1x128xf32> to vector<1x128xf32>
    %24 = vector.broadcast %23 : vector<1x128xf32> to vector<8x128xf32>
    %25 = arith.select %20, %22, %24 : vector<8x128xi1>, vector<8x128xf32>
    %26 = arith.select %16, %18, %25 : vector<8x128xi1>, vector<8x128xf32>
    %c0_12 = arith.constant 0 : index
    %c0_13 = arith.constant 0 : index
    %27 = vector.load %arg9[%c0_12, %c0_13] : memref<8x128xf32, #tpu.memory_space<vmem>>, vector<8x128xf32>
    tpu.vector_store %arg9[%c0_12, %c0_13], %26 {strides = array<i32>} : memref<8x128xf32, #tpu.memory_space<vmem>>, vector<8x128xf32>,
    return
  }
  func.func @transform_0(%arg0: i32) -> (i32, i32) {
    %c0_i32 = arith.constant 0 : i32
    %c0_i32_0 = arith.constant 0 : i32
    return %c0_i32, %arg0 : i32, i32
  }
  func.func @transform_1(%arg0: i32) -> (i32, i32) {
    %c0_i32 = arith.constant 0 : i32
    %c0_i32_0 = arith.constant 0 : i32
    return %c0_i32, %arg0 : i32, i32
  }
  func.func @transform_2(%arg0: i32) -> (i32, i32) {
    %c0_i32 = arith.constant 0 : i32
    %c0_i32_0 = arith.constant 0 : i32
    %c0_i32_1 = arith.constant 0 : i32
    return %c0_i32, %c0_i32_0 : i32, i32
  }
  func.func @transform_3(%arg0: i32) -> (i32, i32) {
    %c0_i32 = arith.constant 0 : i32
    %c0_i32_0 = arith.constant 0 : i32
    %c0_i32_1 = arith.constant 0 : i32
    return %c0_i32, %c0_i32_0 : i32, i32
  }
  func.func @transform_4(%arg0: i32) -> (i32, i32) {
    %c0_i32 = arith.constant 0 : i32
    %c0_i32_0 = arith.constant 0 : i32
    %c0_i32_1 = arith.constant 0 : i32
    return %c0_i32, %c0_i32_0 : i32, i32
  }
  func.func @transform_5(%arg0: i32) -> (i32, i32) {
    %c0_i32 = arith.constant 0 : i32
    %c0_i32_0 = arith.constant 0 : i32
    %c0_i32_1 = arith.constant 0 : i32
    return %c0_i32, %c0_i32_0 : i32, i32
  }
  func.func @transform_6(%arg0: i32) -> (i32, i32) {
    %c0_i32 = arith.constant 0 : i32
    %c0_i32_0 = arith.constant 0 : i32
    %c0_i32_1 = arith.constant 0 : i32
    return %c0_i32, %c0_i32_0 : i32, i32
  }
  func.func @transform_7(%arg0: i32) -> (i32, i32) {
    %c0_i32 = arith.constant 0 : i32
    %c0_i32_0 = arith.constant 0 : i32
    return %c0_i32, %arg0 : i32, i32
  }
  func.func @transform_8(%arg0: i32) -> (i32, i32) {
    %c0_i32 = arith.constant 0 : i32
    %c0_i32_0 = arith.constant 0 : i32
    return %c0_i32, %arg0 : i32, i32
  }
}

</mosaic_0001>

<llo_original>
// kernel: cpg_actor_forward.1
$region0: #{cpg_actor_forward.1}
  #allocation0 [shape = 'u32[]', space=smem, size = 0x4, offset = 0x4, fixed_abs, tag = 'smem constant byte address 0x4 - core index']
  #allocation1 [shape = 'u32[72,128]{1,0:T(1,128)}', space=vmem, size = 0x9000, scoped, tag = 'internal scratch']
  %s0 = inlined_call_operand.vmem [shape: f32[8,768], index: 0, kind: input, shape index: {}]
  %s1 = inlined_call_operand.vmem [shape: f32[24,768], index: 1, kind: input, shape index: {}, may-alias: {1,7}]
  %s2 = inlined_call_operand.vmem [shape: f32[16,1], index: 2, kind: input, shape index: {}]
  %s3 = inlined_call_operand.vmem [shape: f32[8,1], index: 3, kind: input, shape index: {}]
  %s4 = inlined_call_operand.vmem [shape: f32[8,1], index: 4, kind: input, shape index: {}]
  %s5 = inlined_call_operand.vmem [shape: f32[16,16], index: 5, kind: input, shape index: {}]
  %s6 = inlined_call_operand.vmem [shape: f32[16,8], index: 6, kind: input, shape index: {}]
  %s7 = inlined_call_operand.vmem [shape: f32[24,768], index: 7, kind: output, shape index: {0}, may-alias: {1,7}]
  %s8 = inlined_call_operand.vmem [shape: f32[8,384], index: 8, kind: output, shape index: {1}]
  %9 = xla_tuple %s7, %s8
  %s10 = sld [smem:[#allocation0]]
  $region118: #{cpg_actor_forward.1} parent=0
    _
  %s12 = ssub.s32 1, %s10
  %s13 = scalar_select 0, %s12, %s10
  $region1: #{cpg_actor_forward.1} parent=0
    #allocation2 [shape = 'u8[49152]{0}', space=vmem, size = 0xc000, scoped, tag = 'input window, operand 1']
    #allocation3 [shape = 'u8[49152]{0}', space=vmem, size = 0xc000, scoped, tag = 'output window, operand 0']
    loop: start=0, step=1, limit=5
    $region2: #{cpg_actor_forward.1} parent=1 // loop_pre_header
      _
    $region3: #{cpg_actor_forward.1} parent=1 // loop_header
      %s15 = sphi 0, %s19
      %p16 = scmp.ge.s32.totalorder %s15, 5
      %s25 = sphi 0, %s27
      %s28 = sphi 0, %s25
      %s29 = sphi 0, %s28
      %s45 = sphi 0, %s29
      %s51 = sphi 0, %s53
      %s54 = sphi 0, %s51
      %s55 = sphi 0, %s54
      %s71 = sphi 0, %s55
      %s75 = sphi 0, %s75
      %s77 = sphi 0, %s75
      %s78 = sphi 0, %s77
      %s92 = sphi 0, %s78
      %s96 = sphi 0, %s96
      %s98 = sphi 0, %s96
      %s99 = sphi 0, %s98
      %s113 = sphi 0, %s99
      %s117 = sphi 0, %s117
      %s119 = sphi 0, %s117
      %s120 = sphi 0, %s119
      %s134 = sphi 0, %s120
      %s138 = sphi 0, %s138
      %s140 = sphi 0, %s138
      %s141 = sphi 0, %s140
      %s155 = sphi 0, %s141
      %s159 = sphi 0, %s159
      %s161 = sphi 0, %s159
      %s162 = sphi 0, %s161
      %s176 = sphi 0, %s162
      %s182 = sphi 0, %s184
      %s185 = sphi 0, %s182
      %s186 = sphi 0, %s185
      %s202 = sphi 0, %s186
      %s208 = sphi 0, %s210
      %s211 = sphi 0, %s208
      %s212 = sphi 0, %s211
      %s228 = sphi 0, %s212
    $region4: #{cpg_actor_forward.1} parent=1 // loop_header_branch
      %18 = sbr.rel (%p16) target = $region8
    $region5: #{cpg_actor_forward.1} parent=1 // loop_body
      %s20 = ssub.s32 %s15, 1
      %s21 = ssub.s32 %s15, 2
      %s22 = sadd.s32 %s15, 1
      %s23 = ssub.s32 %s15, %s22
      %p24 = scmp.eq.s32.totalorder %s23, 0
      %s26 = sadd.s32 %s25, 1
      %s27 = scalar_select %p24, %s25, %s26
      %p30 = pneg %p24
      %p31 = scmp.eq.s32.totalorder %s15, 2
      %p32 = por %p30, %p31
      %p33 = scmp.ne.s32.totalorder %s25, %s28
      %p34 = scmp.eq.s32.totalorder %s15, 0
      %p35 = por %p33, %p34
      %p36 = scmp.ne.s32.totalorder %s25, %s28
      %p37 = scmp.eq.s32.totalorder %s20, 2
      %p38 = por %p36, %p37
      %p39 = scmp.ne.s32.totalorder %s28, %s29
      %p40 = scmp.eq.s32.totalorder %s20, 0
      %p41 = por %p39, %p40
      %p42 = scmp.ne.s32.totalorder %s28, %s29
      %p43 = scmp.eq.s32.totalorder %s21, 2
      %p44 = por %p42, %p43
      %p46 = scmp.ne.s32.totalorder %s29, %s45
      %p47 = scmp.eq.s32.totalorder %s21, 0
      %p48 = por %p46, %p47
      %s49 = ssub.s32 %s15, %s22
      %p50 = scmp.eq.s32.totalorder %s49, 0
      %s52 = sadd.s32 %s51, 1
      %s53 = scalar_select %p50, %s51, %s52
      %p56 = pneg %p50
      %p57 = scmp.eq.s32.totalorder %s15, 2
      %p58 = por %p56, %p57
      %p59 = scmp.ne.s32.totalorder %s51, %s54
      %p60 = scmp.eq.s32.totalorder %s15, 0
      %p61 = por %p59, %p60
      %p62 = scmp.ne.s32.totalorder %s51, %s54
      %p63 = scmp.eq.s32.totalorder %s20, 2
      %p64 = por %p62, %p63
      %p65 = scmp.ne.s32.totalorder %s54, %s55
      %p66 = scmp.eq.s32.totalorder %s20, 0
      %p67 = por %p65, %p66
      %p68 = scmp.ne.s32.totalorder %s54, %s55
      %p69 = scmp.eq.s32.totalorder %s21, 2
      %p70 = por %p68, %p69
      %p72 = scmp.ne.s32.totalorder %s55, %s71
      %p73 = scmp.eq.s32.totalorder %s21, 0
      %p74 = por %p72, %p73
      %s76 = sadd.s32 %s75, 1
      %p79 = scmp.eq.s32.totalorder %s15, 2
      %p80 = scmp.ne.s32.totalorder %s75, %s77
      %p81 = scmp.eq.s32.totalorder %s15, 0
      %p82 = por %p80, %p81
      %p83 = scmp.ne.s32.totalorder %s75, %s77
      %p84 = scmp.eq.s32.totalorder %s20, 2
      %p85 = por %p83, %p84
      %p86 = scmp.ne.s32.totalorder %s77, %s78
      %p87 = scmp.eq.s32.totalorder %s20, 0
      %p88 = por %p86, %p87
      %p89 = scmp.ne.s32.totalorder %s77, %s78
      %p90 = scmp.eq.s32.totalorder %s21, 2
      %p91 = por %p89, %p90
      %p93 = scmp.ne.s32.totalorder %s78, %s92
      %p94 = scmp.eq.s32.totalorder %s21, 0
      %p95 = por %p93, %p94
      %s97 = sadd.s32 %s96, 1
      %p100 = scmp.eq.s32.totalorder %s15, 2
      %p101 = scmp.ne.s32.totalorder %s96, %s98
      %p102 = scmp.eq.s32.totalorder %s15, 0
      %p103 = por %p101, %p102
      %p104 = scmp.ne.s32.totalorder %s96, %s98
      %p105 = scmp.eq.s32.totalorder %s20, 2
      %p106 = por %p104, %p105
      %p107 = scmp.ne.s32.totalorder %s98, %s99
      %p108 = scmp.eq.s32.totalorder %s20, 0
      %p109 = por %p107, %p108
      %p110 = scmp.ne.s32.totalorder %s98, %s99
      %p111 = scmp.eq.s32.totalorder %s21, 2
      %p112 = por %p110, %p111
      %p114 = scmp.ne.s32.totalorder %s99, %s113
      %p115 = scmp.eq.s32.totalorder %s21, 0
      %p116 = por %p114, %p115
      %s118 = sadd.s32 %s117, 1
      %p121 = scmp.eq.s32.totalorder %s15, 2
      %p122 = scmp.ne.s32.totalorder %s117, %s119
      %p123 = scmp.eq.s32.totalorder %s15, 0
      %p124 = por %p122, %p123
      %p125 = scmp.ne.s32.totalorder %s117, %s119
      %p126 = scmp.eq.s32.totalorder %s20, 2
      %p127 = por %p125, %p126
      %p128 = scmp.ne.s32.totalorder %s119, %s120
      %p129 = scmp.eq.s32.totalorder %s20, 0
      %p130 = por %p128, %p129
      %p131 = scmp.ne.s32.totalorder %s119, %s120
      %p132 = scmp.eq.s32.totalorder %s21, 2
      %p133 = por %p131, %p132
      %p135 = scmp.ne.s32.totalorder %s120, %s134
      %p136 = scmp.eq.s32.totalorder %s21, 0
      %p137 = por %p135, %p136
      %s139 = sadd.s32 %s138, 1
      %p142 = scmp.eq.s32.totalorder %s15, 2
      %p143 = scmp.ne.s32.totalorder %s138, %s140
      %p144 = scmp.eq.s32.totalorder %s15, 0
      %p145 = por %p143, %p144
      %p146 = scmp.ne.s32.totalorder %s138, %s140
      %p147 = scmp.eq.s32.totalorder %s20, 2
      %p148 = por %p146, %p147
      %p149 = scmp.ne.s32.totalorder %s140, %s141
      %p150 = scmp.eq.s32.totalorder %s20, 0
      %p151 = por %p149, %p150
      %p152 = scmp.ne.s32.totalorder %s140, %s141
      %p153 = scmp.eq.s32.totalorder %s21, 2
      %p154 = por %p152, %p153
      %p156 = scmp.ne.s32.totalorder %s141, %s155
      %p157 = scmp.eq.s32.totalorder %s21, 0
      %p158 = por %p156, %p157
      %s160 = sadd.s32 %s159, 1
      %p163 = scmp.eq.s32.totalorder %s15, 2
      %p164 = scmp.ne.s32.totalorder %s159, %s161
      %p165 = scmp.eq.s32.totalorder %s15, 0
      %p166 = por %p164, %p165
      %p167 = scmp.ne.s32.totalorder %s159, %s161
      %p168 = scmp.eq.s32.totalorder %s20, 2
      %p169 = por %p167, %p168
      %p170 = scmp.ne.s32.totalorder %s161, %s162
      %p171 = scmp.eq.s32.totalorder %s20, 0
      %p172 = por %p170, %p171
      %p173 = scmp.ne.s32.totalorder %s161, %s162
      %p174 = scmp.eq.s32.totalorder %s21, 2
      %p175 = por %p173, %p174
      %p177 = scmp.ne.s32.totalorder %s162, %s176
      %p178 = scmp.eq.s32.totalorder %s21, 0
      %p179 = por %p177, %p178
      %s180 = ssub.s32 %s15, %s22
      %p181 = scmp.eq.s32.totalorder %s180, 0
      %s183 = sadd.s32 %s182, 1
      %s184 = scalar_select %p181, %s182, %s183
      %p187 = pneg %p181
      %p188 = scmp.eq.s32.totalorder %s15, 2
      %p189 = por %p187, %p188
      %p190 = scmp.ne.s32.totalorder %s182, %s185
      %p191 = scmp.eq.s32.totalorder %s15, 0
      %p192 = por %p190, %p191
      %p193 = scmp.ne.s32.totalorder %s182, %s185
      %p194 = scmp.eq.s32.totalorder %s20, 2
      %p195 = por %p193, %p194
      %p196 = scmp.ne.s32.totalorder %s185, %s186
      %p197 = scmp.eq.s32.totalorder %s20, 0
      %p198 = por %p196, %p197
      %p199 = scmp.ne.s32.totalorder %s185, %s186
      %p200 = scmp.eq.s32.totalorder %s21, 2
      %p201 = por %p199, %p200
      %p203 = scmp.ne.s32.totalorder %s186, %s202
      %p204 = scmp.eq.s32.totalorder %s21, 0
      %p205 = por %p203, %p204
      %s206 = ssub.s32 %s15, %s22
      %p207 = scmp.eq.s32.totalorder %s206, 0
      %s209 = sadd.s32 %s208, 1
      %s210 = scalar_select %p207, %s208, %s209
      %p213 = pneg %p207
      %p214 = scmp.eq.s32.totalorder %s15, 2
      %p215 = por %p213, %p214
      %p216 = scmp.ne.s32.totalorder %s208, %s211
      %p217 = scmp.eq.s32.totalorder %s15, 0
      %p218 = por %p216, %p217
      %p219 = scmp.ne.s32.totalorder %s208, %s211
      %p220 = scmp.eq.s32.totalorder %s20, 2
      %p221 = por %p219, %p220
      %p222 = scmp.ne.s32.totalorder %s211, %s212
      %p223 = scmp.eq.s32.totalorder %s20, 0
      %p224 = por %p222, %p223
      %p225 = scmp.ne.s32.totalorder %s211, %s212
      %p226 = scmp.eq.s32.totalorder %s21, 2
      %p227 = por %p225, %p226
      %p229 = scmp.ne.s32.totalorder %s212, %s228
      %p230 = scmp.eq.s32.totalorder %s21, 0
      %p231 = por %p229, %p230
      %p232 = scmp.le.s32.totalorder 1, %s15
      %p233 = scmp.lt.s32.totalorder %s15, 4
      %p234 = pnand %p232, %p233
      %p235 = pneg %p234
      // Predicated region
      $region9: #{cpg_actor_forward.1} parent=5 // pred_check
        _
      $region10: #{cpg_actor_forward.1} parent=5 // pred_check_branch
        %237 = sbr.rel (%p234) target = $region12
      $region11: #{cpg_actor_forward.1} parent=5 // pred_region
        %s238 = ssub.s32 %s15, 1
        // Predicated region
        $region13: #{cpg_actor_forward.1} parent=11 // pred_check
          %p239 = pneg %p88
        $region14: #{cpg_actor_forward.1} parent=11 // pred_check_branch
          %241 = sbr.rel (%p239) target = $region16
        $region15: #{cpg_actor_forward.1} parent=11 // pred_region
          _
        $region16: #{cpg_actor_forward.1} parent=11 // pred_fallthru
          _
        // Predicated region
        $region17: #{cpg_actor_forward.1} parent=11 // pred_check
          %p242 = pneg %p109
        $region18: #{cpg_actor_forward.1} parent=11 // pred_check_branch
          %244 = sbr.rel (%p242) target = $region20
        $region19: #{cpg_actor_forward.1} parent=11 // pred_region
          _
        $region20: #{cpg_actor_forward.1} parent=11 // pred_fallthru
          _
        // Predicated region
        $region21: #{cpg_actor_forward.1} parent=11 // pred_check
          %p245 = pneg %p130
        $region22: #{cpg_actor_forward.1} parent=11 // pred_check_branch
          %247 = sbr.rel (%p245) target = $region24
        $region23: #{cpg_actor_forward.1} parent=11 // pred_region
          _
        $region24: #{cpg_actor_forward.1} parent=11 // pred_fallthru
          _
        // Predicated region
        $region25: #{cpg_actor_forward.1} parent=11 // pred_check
          %p248 = pneg %p151
        $region26: #{cpg_actor_forward.1} parent=11 // pred_check_branch
          %250 = sbr.rel (%p248) target = $region28
        $region27: #{cpg_actor_forward.1} parent=11 // pred_region
          _
        $region28: #{cpg_actor_forward.1} parent=11 // pred_fallthru
          _
        // Predicated region
        $region29: #{cpg_actor_forward.1} parent=11 // pred_check
          %p251 = pneg %p172
        $region30: #{cpg_actor_forward.1} parent=11 // pred_check_branch
          %253 = sbr.rel (%p251) target = $region32
        $region31: #{cpg_actor_forward.1} parent=11 // pred_region
          _
        $region32: #{cpg_actor_forward.1} parent=11 // pred_fallthru
          _
      $region12: #{cpg_actor_forward.1} parent=5 // pred_fallthru
        _
      %p254 = scmp.lt.s32.totalorder %s15, 3
      // Predicated region
      $region33: #{cpg_actor_forward.1} parent=5 // pred_check
        %p255 = pneg %p254
      $region34: #{cpg_actor_forward.1} parent=5 // pred_check_branch
        %257 = sbr.rel (%p255) target = $region36
      $region35: #{cpg_actor_forward.1} parent=5 // pred_region
        // Predicated region
        $region37: #{cpg_actor_forward.1} parent=35 // pred_check
          %p258 = pneg %p35
        $region38: #{cpg_actor_forward.1} parent=35 // pred_check_branch
          %260 = sbr.rel (%p258) target = $region40
        $region39: #{cpg_actor_forward.1} parent=35 // pred_region
          %s261 = smul.u32 2, %s15
          %p262 = scmp.lt.s32.totalorder %s261, 5
          %s263 = scalar_select %p262, %s261, 5
          %s264 = smul.addr %s263, 8
          %s265 = scalar_lea.vmem %s0, %s264
          %s266 = smul.u32 2, %s15
        $region40: #{cpg_actor_forward.1} parent=35 // pred_fallthru
          _
        // Predicated region
        $region41: #{cpg_actor_forward.1} parent=35 // pred_check
          %p267 = pneg %p61
        $region42: #{cpg_actor_forward.1} parent=35 // pred_check_branch
          %269 = sbr.rel (%p267) target = $region44
        $region43: #{cpg_actor_forward.1} parent=35 // pred_region
          %s270 = sand.u32 %s51, 1
          %s271 = sand.u32 %s51, 1
          %s272 = smul.addr %s271, 48
          %s273 = scalar_lea.vmem [#allocation2], %s272
          %s274 = smul.u32 2, %s15
          %s275 = smul.addr %s274, 8
          %s276 = scalar_lea.vmem %s1, %s275
          // Predicated region
          $region45: #{cpg_actor_forward.1} parent=43 // pred_check
            _
          $region46: #{cpg_actor_forward.1} parent=43 // pred_check_branch
            %278 = sbr.rel (0) target = $region48
          $region47: #{cpg_actor_forward.1} parent=43 // pred_region
            // Predicated region
            $region49: #{cpg_actor_forward.1} parent=47 // pred_check
              _
            $region50: #{cpg_actor_forward.1} parent=47 // pred_check_branch
              %280 = sbr.rel (0) target = $region52
            $region51: #{cpg_actor_forward.1} parent=47 // pred_region
              loop: start=0, step=1, limit=1
              $region53: #{cpg_actor_forward.1} parent=51 // loop_pre_header
                _
              $region54: #{cpg_actor_forward.1} parent=51 // loop_header
                %s282 = sphi 0, %s286
                %p283 = scmp.ge.s32.totalorder %s282, 1
                %s287 = sphi %s276, %s276
                %s288 = sphi %s273, %s273
              $region55: #{cpg_actor_forward.1} parent=51 // loop_header_branch
                %285 = sbr.rel (%p283) target = $region59
              $region56: #{cpg_actor_forward.1} parent=51 // loop_body
                %v289 = vld [vmem:[%s287] sm:$0xff]
                %290 = vst [vmem:[%s288] sm:$0xff] %v289
                %v291 = vld [vmem:[%s287 + $0x8] sm:$0xff]
                %292 = vst [vmem:[%s288 + $0x8] sm:$0xff] %v291
                %v293 = vld [vmem:[%s287 + $0x30] sm:$0xff]
                %294 = vst [vmem:[%s288 + $0x10] sm:$0xff] %v293
                %v295 = vld [vmem:[%s287 + $0x38] sm:$0xff]
                %296 = vst [vmem:[%s288 + $0x18] sm:$0xff] %v295
                %v297 = vld [vmem:[%s287 + $0x60] sm:$0xff]
                %298 = vst [vmem:[%s288 + $0x20] sm:$0xff] %v297
                %v299 = vld [vmem:[%s287 + $0x68] sm:$0xff]
                %300 = vst [vmem:[%s288 + $0x28] sm:$0xff] %v299
              $region57: #{cpg_actor_forward.1} parent=51 // loop_footer
                %s286 = sadd.s32 1, %s282
              $region58: #{cpg_actor_forward.1} parent=51 // loop_footer_branch
                %281 = sbr.rel target = $region54
              $region59: #{cpg_actor_forward.1} parent=51 // loop_exit
                _
            $region52: #{cpg_actor_forward.1} parent=47 // pred_fallthru
              _
            // Predicated region
            $region60: #{cpg_actor_forward.1} parent=47 // pred_check
              _
            $region61: #{cpg_actor_forward.1} parent=47 // pred_check_branch
              %302 = sbr.rel target = $region63
            $region62: #{cpg_actor_forward.1} parent=47 // pred_region
              _
            $region63: #{cpg_actor_forward.1} parent=47 // pred_fallthru
              _
          $region48: #{cpg_actor_forward.1} parent=43 // pred_fallthru
            _
          %303 = vnop
        $region44: #{cpg_actor_forward.1} parent=35 // pred_fallthru
          _
      $region36: #{cpg_actor_forward.1} parent=5 // pred_fallthru
        _
      %p304 = scmp.le.s32.totalorder 1, %s15
      %p305 = scmp.lt.s32.totalorder %s15, 4
      %p306 = pnand %p304, %p305
      %p307 = pneg %p306
      // Predicated region
      $region64: #{cpg_actor_forward.1} parent=5 // pred_check
        _
      $region65: #{cpg_actor_forward.1} parent=5 // pred_check_branch
        %309 = sbr.rel (%p306) target = $region67
      $region66: #{cpg_actor_forward.1} parent=5 // pred_region
        %s310 = ssub.s32 %s15, 1
        %s311 = sand.u32 %s54, 1
        %s312 = sand.u32 %s54, 1
        %s313 = smul.addr %s312, 48
        %s314 = scalar_lea.vmem [#allocation2], %s313
        // Predicated region
        $region68: #{cpg_actor_forward.1} parent=66 // pred_check
          %p315 = pneg %p67
        $region69: #{cpg_actor_forward.1} parent=66 // pred_check_branch
          %317 = sbr.rel (%p315) target = $region71
        $region70: #{cpg_actor_forward.1} parent=66 // pred_region
          _
        $region71: #{cpg_actor_forward.1} parent=66 // pred_fallthru
          _
        %s318 = smul.u32 2, %s20
        %p319 = scmp.lt.s32.totalorder %s318, 5
        %s320 = scalar_select %p319, %s318, 5
        %s321 = smul.addr %s320, 8
        %s322 = scalar_lea.vmem %s0, %s321
        %p323 = pneg %p41
        %p324 = pneg %p38
        %s325 = sand.u32 %s54, 1
        %s326 = sand.u32 %s54, 1
        %s327 = smul.addr %s326, 48
        %s328 = scalar_lea.vmem [#allocation2], %s327
        %p329 = pneg %p67
        %p330 = pneg %p64
        %p331 = pneg %p88
        %p332 = pneg %p85
        %p333 = pneg %p109
        %p334 = pneg %p106
        %p335 = pneg %p130
        %p336 = pneg %p127
        %p337 = pneg %p151
        %p338 = pneg %p148
        %p339 = pneg %p172
        %p340 = pneg %p169
        %p341 = pneg %p198
        %p342 = pneg %p195
        %s343 = sand.u32 %s185, 1
        %s344 = sand.u32 %s185, 1
        %s345 = smul.addr %s344, 48
        %s346 = scalar_lea.vmem [#allocation3], %s345
        %p347 = pneg %p224
        %p348 = pneg %p221
        %p349 = scmp.lt.s32.totalorder %s20, 2
        %s350 = scalar_select %p349, %s20, 2
        %s351 = smul.addr %s350, 8
        %s352 = scalar_lea.vmem %s8, %s351
        %s353 = smul.u32 2, %s20
        %p354 = scmp.lt.s32.totalorder %s353, 5
        %s355 = scalar_select %p354, %s353, 5
        %s356 = smul.addr %s355, 8
        %s357 = scalar_lea.vmem %s0, %s356
        %s358 = smul.u32 2, %s20
        %s359 = smul.u32 2, %s20
        %s360 = smul.u32 2, %s20
        %p361 = scmp.lt.s32.totalorder %s20, 2
        %s362 = scalar_select %p361, %s20, 2
        %s363 = smul.addr %s362, 8
        %s364 = scalar_lea.vmem %s8, %s363
        %v365 = vld [vmem:[%s5] sm:$0xff]
        %v366 = vld [vmem:[%s5 + $0x8] sm:$0xff]
        %v367 = vld [vmem:[%s6] sm:$0xff]
        %v368 = vld [vmem:[%s6 + $0x8] sm:$0xff]
        %v369 = vld [vmem:[%s2] sm:$0xff]
        %v370 = vld [vmem:[%s2 + $0x8] sm:$0xff]
        %372 = vset.pattern.permute.xlu0 0
        %373 = vperm.xlu0 %372, %v369
        %v374 = vpop.permute.xlu0 %373
        %377 = vset.pattern.permute.xlu0 0
        %378 = vperm.xlu0 %377, %v370
        %v379 = vpop.permute.xlu0 %378
        %v381 = vld [vmem:[%s3] sm:$0xff]
        %383 = vset.pattern.permute.xlu0 0
        %384 = vperm.xlu0 %383, %v381
        %v385 = vpop.permute.xlu0 %384
        %v387 = vld [vmem:[%s4] sm:$0xff]
        %389 = vset.pattern.permute.xlu0 0
        %390 = vperm.xlu0 %389, %v387
        %v391 = vpop.permute.xlu0 %390
        loop: start=0, step=1, limit=2
        $region72: #{cpg_actor_forward.1} parent=66 // loop_pre_header
          _
        $region73: #{cpg_actor_forward.1} parent=66 // loop_header
          %s394 = sphi 0, %s398
          %p395 = scmp.ge.s32.totalorder %s394, 2
          %v399 = vphi -inf, %v1882
          %v400 = vphi -inf, %v1889
          %v401 = vphi -inf, %v1896
        $region74: #{cpg_actor_forward.1} parent=66 // loop_header_branch
          %397 = sbr.rel (%p395) target = $region78
        $region75: #{cpg_actor_forward.1} parent=66 // loop_body
          %s402 = smul.u32 %s394, 128
          %s403 = sshra.s32 %s402, 7
          %s404 = sand.u32 %s402, 127
          %s405 = smul.addr %s403, 8
          %s406 = scalar_lea.vmem %s357, %s405
          %v407 = vld [vmem:[%s406] sm:$0xff]
          %s408 = smul.addr %s403, 8
          %s409 = scalar_lea.vmem %s314, %s408 [#allocation2]
          %v410 = vld [vmem:[%s409] sm:$0xff]
          %v411 = vld [vmem:[%s409 + $0x10] sm:$0xff]
          %v412 = vld [vmem:[%s409 + $0x20] sm:$0xff]
          %vm413 = vcmask 64512
          %v415 = vsel %vm413, %v367, 0
          %v418 = vsel %vm413, %v368, 0
          %420 = vmatpush.msra.mxu0 0.0
          %421 = vmatpush.msra.mxu0 0.0
          %422 = vmatpush.msra.mxu0 0.0
          %423 = vmatpush.msra.mxu0 0.0
          %424 = vmatpush.msra.mxu0 0.0
          %425 = vmatpush.msra.mxu0 0.0
          %426 = vmatpush.msra.mxu0 0.0
          %427 = vmatpush.msra.mxu0 0.0
          %428 = vmatpush.msra.mxu0 0.0
          %429 = vmatpush.msra.mxu0 0.0
          %430 = vmatpush.msra.mxu0 0.0
          %431 = vmatpush.msra.mxu0 0.0
          %432 = vmatpush.msra.mxu0 0.0
          %433 = vmatpush.msra.mxu0 0.0
          %434 = vmatpush.msra.mxu0 0.0
          %435 = vmatpush.msra.mxu0 %v407
          %436 = vmatmul.f32.gmra.mxu0 %v415
          %v437 = vpop.f32.mrf.mxu0
          %v438 = vadd.f32 0.0, %v437
          %439 = vmatmul.f32.gmra.mxu0 %v418
          %v440 = vpop.f32.mrf.mxu0
          %v441 = vadd.f32 0.0, %v440
          %442 = vdwg.mxu0
          %v443 = vadd.f32 %v374, %v438
          %v444 = vadd.f32 %v379, %v441
          %v445 = vand.u32 2147483647, %v410
          %vm446 = vcmp.le.f32.partialorder %v445, 0.7853982
          %vm447 = vcmp.lt.s32.totalorder %v410, 0
          %v448 = vand.u32 %v410, 2139095040
          %v449 = vshrl.u32 %v448, 23
          %v450 = vsub.s32 %v449, 127
          %v451 = vand.u32 2147483647, %v410
          %v452 = vand.u32 %v451, 8388607
          %v453 = vor.u32 %v452, 8388608
          %v454 = vsub.s32 0, %v453
          %v455 = vadd.s32 %v450, 1
          %vm456 = vcmp.gt.s32.totalorder %v455, 0
          %v457 = vsel %vm456, %v455, 0
          %v458 = vshrl.u32 %v457, 5
          %v459 = vand.u32 %v457, 31
          %v460 = vsub.s32 32, %v459
          %v461 = vshrl.u32 683565275, %v460
          %v462 = vshll.u32 683565275, %v459
          %v463 = vshrl.u32 2475754826, %v460
          %v464 = vor.u32 %v462, %v463
          %v465 = vshll.u32 2475754826, %v459
          %v466 = vshrl.u32 2131351028, %v460
          %v467 = vor.u32 %v465, %v466
          %v468 = vshll.u32 2131351028, %v459
          %v469 = vshrl.u32 2102212464, %v460
          %v470 = vor.u32 %v468, %v469
          %v471 = vshll.u32 2102212464, %v459
          %v472 = vshrl.u32 920167782, %v460
          %v473 = vor.u32 %v471, %v472
          %v474 = vshll.u32 920167782, %v459
          %v475 = vshrl.u32 1326507024, %v460
          %v476 = vor.u32 %v474, %v475
          %vm477 = vcmp.lt.s32.totalorder %v458, 1
          %vm478 = vcmp.lt.s32.totalorder %v458, 2
          %vm479 = vcmp.lt.s32.totalorder %v458, 3
          %vm480 = vcmp.lt.s32.totalorder %v458, 4
          %v481 = vsel %vm477, %v461, %v464
          %v482 = vsel %vm480, %v470, 2102212464
          %v483 = vsel %vm479, %v467, %v482
          %v484 = vsel %vm478, %v481, %v483
          %v485 = vsel %vm477, %v464, %v467
          %v486 = vsel %vm480, %v473, 920167782
          %v487 = vsel %vm479, %v470, %v486
          %v488 = vsel %vm478, %v485, %v487
          %v489 = vsel %vm477, %v467, %v470
          %v490 = vsel %vm480, %v476, 1326507024
          %v491 = vsel %vm479, %v473, %v490
          %v492 = vsel %vm478, %v489, %v491
          %v493 = vshll.u32 %v453, 8
          %v494 = vand.u32 %v493, 65535
          %v495 = vshrl.u32 %v493, 16
          %v496 = vand.u32 %v492, 65535
          %v497 = vshrl.u32 %v492, 16
          %v498 = vmul.u32 %v494, %v496
          %v499 = vmul.u32 %v494, %v497
          %v500 = vmul.u32 %v495, %v496
          %v501 = vmul.u32 %v495, %v497
          %v502 = vshll.u32 %v499, 16
          %v503 = vshrl.u32 %v499, 16
          %v504 = vshll.u32 %v500, 16
          %v505 = vshrl.u32 %v500, 16
          %vm506 = vc.u32 %v498, %v502
          %v507 = vsel %vm506, 1, 0
          %v508 = vadd.s32 %v498, %v502
          %v509 = vadd.s32 %v501, %v507
          %vm510 = vc.u32 %v508, %v504
          %v511 = vsel %vm510, 1, 0
          %v512 = vadd.s32 %v508, %v504
          %v513 = vadd.s32 %v509, %v511
          %v514 = vadd.s32 %v513, %v503
          %v515 = vadd.s32 %v514, %v505
          %v516 = vand.u32 %v493, 65535
          %v517 = vshrl.u32 %v493, 16
          %v518 = vand.u32 %v488, 65535
          %v519 = vshrl.u32 %v488, 16
          %v520 = vmul.u32 %v516, %v518
          %v521 = vmul.u32 %v516, %v519
          %v522 = vmul.u32 %v517, %v518
          %v523 = vmul.u32 %v517, %v519
          %v524 = vshll.u32 %v521, 16
          %v525 = vshrl.u32 %v521, 16
          %v526 = vshll.u32 %v522, 16
          %v527 = vshrl.u32 %v522, 16
          %vm528 = vc.u32 %v520, %v524
          %v529 = vsel %vm528, 1, 0
          %v530 = vadd.s32 %v520, %v524
          %v531 = vadd.s32 %v523, %v529
          %vm532 = vc.u32 %v530, %v526
          %v533 = vsel %vm532, 1, 0
          %v534 = vadd.s32 %v530, %v526
          %v535 = vadd.s32 %v531, %v533
          %v536 = vadd.s32 %v535, %v525
          %v537 = vadd.s32 %v536, %v527
          %v538 = vmul.u32 %v493, %v484
          %v539 = vadd.s32 %v515, %v534
          %vm540 = vc.u32 %v515, %v534
          %v541 = vadd.s32 %v537, 1
          %v542 = vsel %vm540, %v541, %v537
          %v543 = vadd.s32 %v538, %v542
          %v544 = vadd.s32 %v543, 536870912
          %v545 = vshrl.u32 %v544, 30
          %v546 = vshll.u32 %v545, 30
          %v547 = vsub.s32 %v543, %v546
          %vm548 = vcmp.lt.s32.totalorder %v547, 0
          %v549 = vsub.s32 0, %v547
          %v550 = vsel %vm548, %v549, %v547
          %v551 = vclz %v550
          %v552 = vsub.s32 %v551, 2
          %vm553 = vcmp.gt.s32.totalorder 0, %v552
          %v554 = vsel %vm553, 0, %v552
          %v555 = vsub.s32 32, %v554
          %v556 = vshll.u32 %v547, %v554
          %v557 = vshrl.u32 %v539, %v555
          %v558 = vor.u32 %v556, %v557
          %v559 = vsub.s32 4294967266, %v554
          %v560 = vadd.s32 %v559, 127
          %v561 = vshll.u32 %v560, 23
          %v562 = vor.u32 4788187, %v561
          %v563 = vand.u32 2147483647, %v562
          %v565 = vcvt.s32.f32 %v558
          %v566 = vmul.f32 %v565, %v563
          %v567 = vxor.u32 %v566, 2147483648
          %v568 = vsel %vm447, %v567, %v566
          %v569 = vsub.s32 4, %v545
          %v570 = vsel %vm447, %v569, %v545
          %v571 = vsel %vm446, %v410, %v568
          %v572 = vsel %vm446, 0, %v570
          %v573 = vmul.f32 %v571, %v571
          %v574 = vmul.f32 %v573, -0.001358992
          %v575 = vadd.f32 %v574, 0.041655596
          %v576 = vmul.f32 %v573, %v575
          %v577 = vadd.f32 %v576, -0.4999988
          %v578 = vmul.f32 %v573, %v577
          %v579 = vadd.f32 1.0, %v578
          %v580 = vmul.f32 %v571, %v571
          %v581 = vmul.f32 %v580, -0.00019511016
          %v582 = vadd.f32 %v581, 0.008332121
          %v583 = vmul.f32 %v580, %v582
          %v584 = vadd.f32 %v583, -0.16666654
          %v585 = vmul.f32 %v580, %v584
          %v586 = vadd.f32 %v585, 1.0
          %v587 = vmul.f32 %v586, %v571
          %vm588 = vweird.f32 %v410
          %v589 = vadd.s32 %v572, 3
          %v590 = vand.u32 %v589, 3
          %vm591 = vcmp.lt.s32.totalorder %v590, 2
          %vm592 = vcmp.eq.s32.totalorder %v590, 0
          %v593 = vxor.u32 %v587, 2147483648
          %v594 = vsel %vm592, %v579, %v593
          %vm595 = vcmp.eq.s32.totalorder %v590, 2
          %v596 = vxor.u32 %v579, 2147483648
          %v597 = vsel %vm595, %v596, %v587
          %v598 = vsel %vm591, %v594, %v597
          %v599 = vsel %vm588, nan, %v598
          %v600 = vand.u32 2147483647, %v410
          %vm601 = vcmp.le.f32.partialorder %v600, 0.7853982
          %vm602 = vcmp.lt.s32.totalorder %v410, 0
          %v603 = vand.u32 %v410, 2139095040
          %v604 = vshrl.u32 %v603, 23
          %v605 = vsub.s32 %v604, 127
          %v606 = vand.u32 2147483647, %v410
          %v607 = vand.u32 %v606, 8388607
          %v608 = vor.u32 %v607, 8388608
          %v609 = vsub.s32 0, %v608
          %v610 = vadd.s32 %v605, 1
          %vm611 = vcmp.gt.s32.totalorder %v610, 0
          %v612 = vsel %vm611, %v610, 0
          %v613 = vshrl.u32 %v612, 5
          %v614 = vand.u32 %v612, 31
          %v615 = vsub.s32 32, %v614
          %v616 = vshrl.u32 683565275, %v615
          %v617 = vshll.u32 683565275, %v614
          %v618 = vshrl.u32 2475754826, %v615
          %v619 = vor.u32 %v617, %v618
          %v620 = vshll.u32 2475754826, %v614
          %v621 = vshrl.u32 2131351028, %v615
          %v622 = vor.u32 %v620, %v621
          %v623 = vshll.u32 2131351028, %v614
          %v624 = vshrl.u32 2102212464, %v615
          %v625 = vor.u32 %v623, %v624
          %v626 = vshll.u32 2102212464, %v614
          %v627 = vshrl.u32 920167782, %v615
          %v628 = vor.u32 %v626, %v627
          %v629 = vshll.u32 920167782, %v614
          %v630 = vshrl.u32 1326507024, %v615
          %v631 = vor.u32 %v629, %v630
          %vm632 = vcmp.lt.s32.totalorder %v613, 1
          %vm633 = vcmp.lt.s32.totalorder %v613, 2
          %vm634 = vcmp.lt.s32.totalorder %v613, 3
          %vm635 = vcmp.lt.s32.totalorder %v613, 4
          %v636 = vsel %vm632, %v616, %v619
          %v637 = vsel %vm635, %v625, 2102212464
          %v638 = vsel %vm634, %v622, %v637
          %v639 = vsel %vm633, %v636, %v638
          %v640 = vsel %vm632, %v619, %v622
          %v641 = vsel %vm635, %v628, 920167782
          %v642 = vsel %vm634, %v625, %v641
          %v643 = vsel %vm633, %v640, %v642
          %v644 = vsel %vm632, %v622, %v625
          %v645 = vsel %vm635, %v631, 1326507024
          %v646 = vsel %vm634, %v628, %v645
          %v647 = vsel %vm633, %v644, %v646
          %v648 = vshll.u32 %v608, 8
          %v649 = vand.u32 %v648, 65535
          %v650 = vshrl.u32 %v648, 16
          %v651 = vand.u32 %v647, 65535
          %v652 = vshrl.u32 %v647, 16
          %v653 = vmul.u32 %v649, %v651
          %v654 = vmul.u32 %v649, %v652
          %v655 = vmul.u32 %v650, %v651
          %v656 = vmul.u32 %v650, %v652
          %v657 = vshll.u32 %v654, 16
          %v658 = vshrl.u32 %v654, 16
          %v659 = vshll.u32 %v655, 16
          %v660 = vshrl.u32 %v655, 16
          %vm661 = vc.u32 %v653, %v657
          %v662 = vsel %vm661, 1, 0
          %v663 = vadd.s32 %v653, %v657
          %v664 = vadd.s32 %v656, %v662
          %vm665 = vc.u32 %v663, %v659
          %v666 = vsel %vm665, 1, 0
          %v667 = vadd.s32 %v663, %v659
          %v668 = vadd.s32 %v664, %v666
          %v669 = vadd.s32 %v668, %v658
          %v670 = vadd.s32 %v669, %v660
          %v671 = vand.u32 %v648, 65535
          %v672 = vshrl.u32 %v648, 16
          %v673 = vand.u32 %v643, 65535
          %v674 = vshrl.u32 %v643, 16
          %v675 = vmul.u32 %v671, %v673
          %v676 = vmul.u32 %v671, %v674
          %v677 = vmul.u32 %v672, %v673
          %v678 = vmul.u32 %v672, %v674
          %v679 = vshll.u32 %v676, 16
          %v680 = vshrl.u32 %v676, 16
          %v681 = vshll.u32 %v677, 16
          %v682 = vshrl.u32 %v677, 16
          %vm683 = vc.u32 %v675, %v679
          %v684 = vsel %vm683, 1, 0
          %v685 = vadd.s32 %v675, %v679
          %v686 = vadd.s32 %v678, %v684
          %vm687 = vc.u32 %v685, %v681
          %v688 = vsel %vm687, 1, 0
          %v689 = vadd.s32 %v685, %v681
          %v690 = vadd.s32 %v686, %v688
          %v691 = vadd.s32 %v690, %v680
          %v692 = vadd.s32 %v691, %v682
          %v693 = vmul.u32 %v648, %v639
          %v694 = vadd.s32 %v670, %v689
          %vm695 = vc.u32 %v670, %v689
          %v696 = vadd.s32 %v692, 1
          %v697 = vsel %vm695, %v696, %v692
          %v698 = vadd.s32 %v693, %v697
          %v699 = vadd.s32 %v698, 536870912
          %v700 = vshrl.u32 %v699, 30
          %v701 = vshll.u32 %v700, 30
          %v702 = vsub.s32 %v698, %v701
          %vm703 = vcmp.lt.s32.totalorder %v702, 0
          %v704 = vsub.s32 0, %v702
          %v705 = vsel %vm703, %v704, %v702
          %v706 = vclz %v705
          %v707 = vsub.s32 %v706, 2
          %vm708 = vcmp.gt.s32.totalorder 0, %v707
          %v709 = vsel %vm708, 0, %v707
          %v710 = vsub.s32 32, %v709
          %v711 = vshll.u32 %v702, %v709
          %v712 = vshrl.u32 %v694, %v710
          %v713 = vor.u32 %v711, %v712
          %v714 = vsub.s32 4294967266, %v709
          %v715 = vadd.s32 %v714, 127
          %v716 = vshll.u32 %v715, 23
          %v717 = vor.u32 4788187, %v716
          %v718 = vand.u32 2147483647, %v717
          %v720 = vcvt.s32.f32 %v713
          %v721 = vmul.f32 %v720, %v718
          %v722 = vxor.u32 %v721, 2147483648
          %v723 = vsel %vm602, %v722, %v721
          %v724 = vsub.s32 4, %v700
          %v725 = vsel %vm602, %v724, %v700
          %v726 = vsel %vm601, %v410, %v723
          %v727 = vsel %vm601, 0, %v725
          %v728 = vmul.f32 %v726, %v726
          %v729 = vmul.f32 %v728, -0.001358992
          %v730 = vadd.f32 %v729, 0.041655596
          %v731 = vmul.f32 %v728, %v730
          %v732 = vadd.f32 %v731, -0.4999988
          %v733 = vmul.f32 %v728, %v732
          %v734 = vadd.f32 1.0, %v733
          %v735 = vmul.f32 %v726, %v726
          %v736 = vmul.f32 %v735, -0.00019511016
          %v737 = vadd.f32 %v736, 0.008332121
          %v738 = vmul.f32 %v735, %v737
          %v739 = vadd.f32 %v738, -0.16666654
          %v740 = vmul.f32 %v735, %v739
          %v741 = vadd.f32 %v740, 1.0
          %v742 = vmul.f32 %v741, %v726
          %vm743 = vweird.f32 %v410
          %v744 = vand.u32 %v727, 3
          %vm745 = vcmp.lt.s32.totalorder %v744, 2
          %vm746 = vcmp.eq.s32.totalorder %v744, 0
          %v747 = vxor.u32 %v742, 2147483648
          %v748 = vsel %vm746, %v734, %v747
          %vm749 = vcmp.eq.s32.totalorder %v744, 2
          %v750 = vxor.u32 %v734, 2147483648
          %v751 = vsel %vm749, %v750, %v742
          %v752 = vsel %vm745, %v748, %v751
          %v753 = vsel %vm743, nan, %v752
          %v754 = vmul.f32 %v411, %v599
          %v755 = vmul.f32 %v411, %v753
          %vm756 = vcmask 130048
          %v758 = vsel %vm756, %v365, 0
          %v761 = vsel %vm756, %v366, 0
          %763 = vmatpush.msra.mxu0 0.0
          %764 = vmatpush.msra.mxu0 0.0
          %765 = vmatpush.msra.mxu0 0.0
          %766 = vmatpush.msra.mxu0 0.0
          %767 = vmatpush.msra.mxu0 0.0
          %768 = vmatpush.msra.mxu0 0.0
          %769 = vmatpush.msra.mxu0 0.0
          %770 = vmatpush.msra.mxu0 0.0
          %771 = vmatpush.msra.mxu0 0.0
          %772 = vmatpush.msra.mxu0 0.0
          %773 = vmatpush.msra.mxu0 0.0
          %774 = vmatpush.msra.mxu0 0.0
          %775 = vmatpush.msra.mxu0 0.0
          %776 = vmatpush.msra.mxu0 0.0
          %777 = vmatpush.msra.mxu0 %v755
          %778 = vmatpush.msra.mxu0 %v754
          %779 = vmatmul.f32.gmra.mxu0 %v758
          %v780 = vpop.f32.mrf.mxu0
          %v781 = vadd.f32 0.0, %v780
          %782 = vmatmul.f32.gmra.mxu0 %v761
          %v783 = vpop.f32.mrf.mxu0
          %v784 = vadd.f32 0.0, %v783
          %785 = vdwg.mxu0
          %v786 = vmul.f32 %v753, %v781
          %v787 = vmul.f32 %v599, %v784
          %v788 = vsub.f32 %v786, %v787
          %v789 = vadd.f32 %v443, %v788
          %v790 = vmul.f32 %v391, %v411
          %v791 = vsub.f32 %v444, %v790
          %v792 = vmul.f32 %v385, %v412
          %v793 = vsub.f32 %v791, %v792
          %v794 = vmul.f32 %v789, 0.01
          %v795 = vmul.f32 %v794, 0.33333334
          %v796 = vadd.f32 %v410, %v795
          %v797 = vmul.f32 %v412, 0.01
          %v798 = vmul.f32 %v797, 0.33333334
          %v799 = vadd.f32 %v411, %v798
          %v800 = vmul.f32 %v793, 0.01
          %v801 = vmul.f32 %v800, 0.33333334
          %v802 = vadd.f32 %v412, %v801
          %v803 = vand.u32 2147483647, %v796
          %vm804 = vcmp.le.f32.partialorder %v803, 0.7853982
          %vm805 = vcmp.lt.s32.totalorder %v796, 0
          %v806 = vand.u32 %v796, 2139095040
          %v807 = vshrl.u32 %v806, 23
          %v808 = vsub.s32 %v807, 127
          %v809 = vand.u32 2147483647, %v796
          %v810 = vand.u32 %v809, 8388607
          %v811 = vor.u32 %v810, 8388608
          %v812 = vsub.s32 0, %v811
          %v813 = vadd.s32 %v808, 1
          %vm814 = vcmp.gt.s32.totalorder %v813, 0
          %v815 = vsel %vm814, %v813, 0
          %v816 = vshrl.u32 %v815, 5
          %v817 = vand.u32 %v815, 31
          %v818 = vsub.s32 32, %v817
          %v819 = vshrl.u32 683565275, %v818
          %v820 = vshll.u32 683565275, %v817
          %v821 = vshrl.u32 2475754826, %v818
          %v822 = vor.u32 %v820, %v821
          %v823 = vshll.u32 2475754826, %v817
          %v824 = vshrl.u32 2131351028, %v818
          %v825 = vor.u32 %v823, %v824
          %v826 = vshll.u32 2131351028, %v817
          %v827 = vshrl.u32 2102212464, %v818
          %v828 = vor.u32 %v826, %v827
          %v829 = vshll.u32 2102212464, %v817
          %v830 = vshrl.u32 920167782, %v818
          %v831 = vor.u32 %v829, %v830
          %v832 = vshll.u32 920167782, %v817
          %v833 = vshrl.u32 1326507024, %v818
          %v834 = vor.u32 %v832, %v833
          %vm835 = vcmp.lt.s32.totalorder %v816, 1
          %vm836 = vcmp.lt.s32.totalorder %v816, 2
          %vm837 = vcmp.lt.s32.totalorder %v816, 3
          %vm838 = vcmp.lt.s32.totalorder %v816, 4
          %v839 = vsel %vm835, %v819, %v822
          %v840 = vsel %vm838, %v828, 2102212464
          %v841 = vsel %vm837, %v825, %v840
          %v842 = vsel %vm836, %v839, %v841
          %v843 = vsel %vm835, %v822, %v825
          %v844 = vsel %vm838, %v831, 920167782
          %v845 = vsel %vm837, %v828, %v844
          %v846 = vsel %vm836, %v843, %v845
          %v847 = vsel %vm835, %v825, %v828
          %v848 = vsel %vm838, %v834, 1326507024
          %v849 = vsel %vm837, %v831, %v848
          %v850 = vsel %vm836, %v847, %v849
          %v851 = vshll.u32 %v811, 8
          %v852 = vand.u32 %v851, 65535
          %v853 = vshrl.u32 %v851, 16
          %v854 = vand.u32 %v850, 65535
          %v855 = vshrl.u32 %v850, 16
          %v856 = vmul.u32 %v852, %v854
          %v857 = vmul.u32 %v852, %v855
          %v858 = vmul.u32 %v853, %v854
          %v859 = vmul.u32 %v853, %v855
          %v860 = vshll.u32 %v857, 16
          %v861 = vshrl.u32 %v857, 16
          %v862 = vshll.u32 %v858, 16
          %v863 = vshrl.u32 %v858, 16
          %vm864 = vc.u32 %v856, %v860
          %v865 = vsel %vm864, 1, 0
          %v866 = vadd.s32 %v856, %v860
          %v867 = vadd.s32 %v859, %v865
          %vm868 = vc.u32 %v866, %v862
          %v869 = vsel %vm868, 1, 0
          %v870 = vadd.s32 %v866, %v862
          %v871 = vadd.s32 %v867, %v869
          %v872 = vadd.s32 %v871, %v861
          %v873 = vadd.s32 %v872, %v863
          %v874 = vand.u32 %v851, 65535
          %v875 = vshrl.u32 %v851, 16
          %v876 = vand.u32 %v846, 65535
          %v877 = vshrl.u32 %v846, 16
          %v878 = vmul.u32 %v874, %v876
          %v879 = vmul.u32 %v874, %v877
          %v880 = vmul.u32 %v875, %v876
          %v881 = vmul.u32 %v875, %v877
          %v882 = vshll.u32 %v879, 16
          %v883 = vshrl.u32 %v879, 16
          %v884 = vshll.u32 %v880, 16
          %v885 = vshrl.u32 %v880, 16
          %vm886 = vc.u32 %v878, %v882
          %v887 = vsel %vm886, 1, 0
          %v888 = vadd.s32 %v878, %v882
          %v889 = vadd.s32 %v881, %v887
          %vm890 = vc.u32 %v888, %v884
          %v891 = vsel %vm890, 1, 0
          %v892 = vadd.s32 %v888, %v884
          %v893 = vadd.s32 %v889, %v891
          %v894 = vadd.s32 %v893, %v883
          %v895 = vadd.s32 %v894, %v885
          %v896 = vmul.u32 %v851, %v842
          %v897 = vadd.s32 %v873, %v892
          %vm898 = vc.u32 %v873, %v892
          %v899 = vadd.s32 %v895, 1
          %v900 = vsel %vm898, %v899, %v895
          %v901 = vadd.s32 %v896, %v900
          %v902 = vadd.s32 %v901, 536870912
          %v903 = vshrl.u32 %v902, 30
          %v904 = vshll.u32 %v903, 30
          %v905 = vsub.s32 %v901, %v904
          %vm906 = vcmp.lt.s32.totalorder %v905, 0
          %v907 = vsub.s32 0, %v905
          %v908 = vsel %vm906, %v907, %v905
          %v909 = vclz %v908
          %v910 = vsub.s32 %v909, 2
          %vm911 = vcmp.gt.s32.totalorder 0, %v910
          %v912 = vsel %vm911, 0, %v910
          %v913 = vsub.s32 32, %v912
          %v914 = vshll.u32 %v905, %v912
          %v915 = vshrl.u32 %v897, %v913
          %v916 = vor.u32 %v914, %v915
          %v917 = vsub.s32 4294967266, %v912
          %v918 = vadd.s32 %v917, 127
          %v919 = vshll.u32 %v918, 23
          %v920 = vor.u32 4788187, %v919
          %v921 = vand.u32 2147483647, %v920
          %v923 = vcvt.s32.f32 %v916
          %v924 = vmul.f32 %v923, %v921
          %v925 = vxor.u32 %v924, 2147483648
          %v926 = vsel %vm805, %v925, %v924
          %v927 = vsub.s32 4, %v903
          %v928 = vsel %vm805, %v927, %v903
          %v929 = vsel %vm804, %v796, %v926
          %v930 = vsel %vm804, 0, %v928
          %v931 = vmul.f32 %v929, %v929
          %v932 = vmul.f32 %v931, -0.001358992
          %v933 = vadd.f32 %v932, 0.041655596
          %v934 = vmul.f32 %v931, %v933
          %v935 = vadd.f32 %v934, -0.4999988
          %v936 = vmul.f32 %v931, %v935
          %v937 = vadd.f32 1.0, %v936
          %v938 = vmul.f32 %v929, %v929
          %v939 = vmul.f32 %v938, -0.00019511016
          %v940 = vadd.f32 %v939, 0.008332121
          %v941 = vmul.f32 %v938, %v940
          %v942 = vadd.f32 %v941, -0.16666654
          %v943 = vmul.f32 %v938, %v942
          %v944 = vadd.f32 %v943, 1.0
          %v945 = vmul.f32 %v944, %v929
          %vm946 = vweird.f32 %v796
          %v947 = vadd.s32 %v930, 3
          %v948 = vand.u32 %v947, 3
          %vm949 = vcmp.lt.s32.totalorder %v948, 2
          %vm950 = vcmp.eq.s32.totalorder %v948, 0
          %v951 = vxor.u32 %v945, 2147483648
          %v952 = vsel %vm950, %v937, %v951
          %vm953 = vcmp.eq.s32.totalorder %v948, 2
          %v954 = vxor.u32 %v937, 2147483648
          %v955 = vsel %vm953, %v954, %v945
          %v956 = vsel %vm949, %v952, %v955
          %v957 = vsel %vm946, nan, %v956
          %v958 = vand.u32 2147483647, %v796
          %vm959 = vcmp.le.f32.partialorder %v958, 0.7853982
          %vm960 = vcmp.lt.s32.totalorder %v796, 0
          %v961 = vand.u32 %v796, 2139095040
          %v962 = vshrl.u32 %v961, 23
          %v963 = vsub.s32 %v962, 127
          %v964 = vand.u32 2147483647, %v796
          %v965 = vand.u32 %v964, 8388607
          %v966 = vor.u32 %v965, 8388608
          %v967 = vsub.s32 0, %v966
          %v968 = vadd.s32 %v963, 1
          %vm969 = vcmp.gt.s32.totalorder %v968, 0
          %v970 = vsel %vm969, %v968, 0
          %v971 = vshrl.u32 %v970, 5
          %v972 = vand.u32 %v970, 31
          %v973 = vsub.s32 32, %v972
          %v974 = vshrl.u32 683565275, %v973
          %v975 = vshll.u32 683565275, %v972
          %v976 = vshrl.u32 2475754826, %v973
          %v977 = vor.u32 %v975, %v976
          %v978 = vshll.u32 2475754826, %v972
          %v979 = vshrl.u32 2131351028, %v973
          %v980 = vor.u32 %v978, %v979
          %v981 = vshll.u32 2131351028, %v972
          %v982 = vshrl.u32 2102212464, %v973
          %v983 = vor.u32 %v981, %v982
          %v984 = vshll.u32 2102212464, %v972
          %v985 = vshrl.u32 920167782, %v973
          %v986 = vor.u32 %v984, %v985
          %v987 = vshll.u32 920167782, %v972
          %v988 = vshrl.u32 1326507024, %v973
          %v989 = vor.u32 %v987, %v988
          %vm990 = vcmp.lt.s32.totalorder %v971, 1
          %vm991 = vcmp.lt.s32.totalorder %v971, 2
          %vm992 = vcmp.lt.s32.totalorder %v971, 3
          %vm993 = vcmp.lt.s32.totalorder %v971, 4
          %v994 = vsel %vm990, %v974, %v977
          %v995 = vsel %vm993, %v983, 2102212464
          %v996 = vsel %vm992, %v980, %v995
          %v997 = vsel %vm991, %v994, %v996
          %v998 = vsel %vm990, %v977, %v980
          %v999 = vsel %vm993, %v986, 920167782
          %v1000 = vsel %vm992, %v983, %v999
          %v1001 = vsel %vm991, %v998, %v1000
          %v1002 = vsel %vm990, %v980, %v983
          %v1003 = vsel %vm993, %v989, 1326507024
          %v1004 = vsel %vm992, %v986, %v1003
          %v1005 = vsel %vm991, %v1002, %v1004
          %v1006 = vshll.u32 %v966, 8
          %v1007 = vand.u32 %v1006, 65535
          %v1008 = vshrl.u32 %v1006, 16
          %v1009 = vand.u32 %v1005, 65535
          %v1010 = vshrl.u32 %v1005, 16
          %v1011 = vmul.u32 %v1007, %v1009
          %v1012 = vmul.u32 %v1007, %v1010
          %v1013 = vmul.u32 %v1008, %v1009
          %v1014 = vmul.u32 %v1008, %v1010
          %v1015 = vshll.u32 %v1012, 16
          %v1016 = vshrl.u32 %v1012, 16
          %v1017 = vshll.u32 %v1013, 16
          %v1018 = vshrl.u32 %v1013, 16
          %vm1019 = vc.u32 %v1011, %v1015
          %v1020 = vsel %vm1019, 1, 0
          %v1021 = vadd.s32 %v1011, %v1015
          %v1022 = vadd.s32 %v1014, %v1020
          %vm1023 = vc.u32 %v1021, %v1017
          %v1024 = vsel %vm1023, 1, 0
          %v1025 = vadd.s32 %v1021, %v1017
          %v1026 = vadd.s32 %v1022, %v1024
          %v1027 = vadd.s32 %v1026, %v1016
          %v1028 = vadd.s32 %v1027, %v1018
          %v1029 = vand.u32 %v1006, 65535
          %v1030 = vshrl.u32 %v1006, 16
          %v1031 = vand.u32 %v1001, 65535
          %v1032 = vshrl.u32 %v1001, 16
          %v1033 = vmul.u32 %v1029, %v1031
          %v1034 = vmul.u32 %v1029, %v1032
          %v1035 = vmul.u32 %v1030, %v1031
          %v1036 = vmul.u32 %v1030, %v1032
          %v1037 = vshll.u32 %v1034, 16
          %v1038 = vshrl.u32 %v1034, 16
          %v1039 = vshll.u32 %v1035, 16
          %v1040 = vshrl.u32 %v1035, 16
          %vm1041 = vc.u32 %v1033, %v1037
          %v1042 = vsel %vm1041, 1, 0
          %v1043 = vadd.s32 %v1033, %v1037
          %v1044 = vadd.s32 %v1036, %v1042
          %vm1045 = vc.u32 %v1043, %v1039
          %v1046 = vsel %vm1045, 1, 0
          %v1047 = vadd.s32 %v1043, %v1039
          %v1048 = vadd.s32 %v1044, %v1046
          %v1049 = vadd.s32 %v1048, %v1038
          %v1050 = vadd.s32 %v1049, %v1040
          %v1051 = vmul.u32 %v1006, %v997
          %v1052 = vadd.s32 %v1028, %v1047
          %vm1053 = vc.u32 %v1028, %v1047
          %v1054 = vadd.s32 %v1050, 1
          %v1055 = vsel %vm1053, %v1054, %v1050
          %v1056 = vadd.s32 %v1051, %v1055
          %v1057 = vadd.s32 %v1056, 536870912
          %v1058 = vshrl.u32 %v1057, 30
          %v1059 = vshll.u32 %v1058, 30
          %v1060 = vsub.s32 %v1056, %v1059
          %vm1061 = vcmp.lt.s32.totalorder %v1060, 0
          %v1062 = vsub.s32 0, %v1060
          %v1063 = vsel %vm1061, %v1062, %v1060
          %v1064 = vclz %v1063
          %v1065 = vsub.s32 %v1064, 2
          %vm1066 = vcmp.gt.s32.totalorder 0, %v1065
          %v1067 = vsel %vm1066, 0, %v1065
          %v1068 = vsub.s32 32, %v1067
          %v1069 = vshll.u32 %v1060, %v1067
          %v1070 = vshrl.u32 %v1052, %v1068
          %v1071 = vor.u32 %v1069, %v1070
          %v1072 = vsub.s32 4294967266, %v1067
          %v1073 = vadd.s32 %v1072, 127
          %v1074 = vshll.u32 %v1073, 23
          %v1075 = vor.u32 4788187, %v1074
          %v1076 = vand.u32 2147483647, %v1075
          %v1078 = vcvt.s32.f32 %v1071
          %v1079 = vmul.f32 %v1078, %v1076
          %v1080 = vxor.u32 %v1079, 2147483648
          %v1081 = vsel %vm960, %v1080, %v1079
          %v1082 = vsub.s32 4, %v1058
          %v1083 = vsel %vm960, %v1082, %v1058
          %v1084 = vsel %vm959, %v796, %v1081
          %v1085 = vsel %vm959, 0, %v1083
          %v1086 = vmul.f32 %v1084, %v1084
          %v1087 = vmul.f32 %v1086, -0.001358992
          %v1088 = vadd.f32 %v1087, 0.041655596
          %v1089 = vmul.f32 %v1086, %v1088
          %v1090 = vadd.f32 %v1089, -0.4999988
          %v1091 = vmul.f32 %v1086, %v1090
          %v1092 = vadd.f32 1.0, %v1091
          %v1093 = vmul.f32 %v1084, %v1084
          %v1094 = vmul.f32 %v1093, -0.00019511016
          %v1095 = vadd.f32 %v1094, 0.008332121
          %v1096 = vmul.f32 %v1093, %v1095
          %v1097 = vadd.f32 %v1096, -0.16666654
          %v1098 = vmul.f32 %v1093, %v1097
          %v1099 = vadd.f32 %v1098, 1.0
          %v1100 = vmul.f32 %v1099, %v1084
          %vm1101 = vweird.f32 %v796
          %v1102 = vand.u32 %v1085, 3
          %vm1103 = vcmp.lt.s32.totalorder %v1102, 2
          %vm1104 = vcmp.eq.s32.totalorder %v1102, 0
          %v1105 = vxor.u32 %v1100, 2147483648
          %v1106 = vsel %vm1104, %v1092, %v1105
          %vm1107 = vcmp.eq.s32.totalorder %v1102, 2
          %v1108 = vxor.u32 %v1092, 2147483648
          %v1109 = vsel %vm1107, %v1108, %v1100
          %v1110 = vsel %vm1103, %v1106, %v1109
          %v1111 = vsel %vm1101, nan, %v1110
          %v1112 = vmul.f32 %v799, %v957
          %v1113 = vmul.f32 %v799, %v1111
          %1114 = vmatpush.msra.mxu0 0.0
          %1115 = vmatpush.msra.mxu0 0.0
          %1116 = vmatpush.msra.mxu0 0.0
          %1117 = vmatpush.msra.mxu0 0.0
          %1118 = vmatpush.msra.mxu0 0.0
          %1119 = vmatpush.msra.mxu0 0.0
          %1120 = vmatpush.msra.mxu0 0.0
          %1121 = vmatpush.msra.mxu0 0.0
          %1122 = vmatpush.msra.mxu0 0.0
          %1123 = vmatpush.msra.mxu0 0.0
          %1124 = vmatpush.msra.mxu0 0.0
          %1125 = vmatpush.msra.mxu0 0.0
          %1126 = vmatpush.msra.mxu0 0.0
          %1127 = vmatpush.msra.mxu0 0.0
          %1128 = vmatpush.msra.mxu0 %v1113
          %1129 = vmatpush.msra.mxu0 %v1112
          %1130 = vmatmul.f32.gmra.mxu0 %v758
          %v1131 = vpop.f32.mrf.mxu0
          %v1132 = vadd.f32 0.0, %v1131
          %1133 = vmatmul.f32.gmra.mxu0 %v761
          %v1134 = vpop.f32.mrf.mxu0
          %v1135 = vadd.f32 0.0, %v1134
          %1136 = vdwg.mxu0
          %v1137 = vmul.f32 %v1111, %v1132
          %v1138 = vmul.f32 %v957, %v1135
          %v1139 = vsub.f32 %v1137, %v1138
          %v1140 = vadd.f32 %v443, %v1139
          %v1141 = vmul.f32 %v391, %v799
          %v1142 = vsub.f32 %v444, %v1141
          %v1143 = vmul.f32 %v385, %v802
          %v1144 = vsub.f32 %v1142, %v1143
          %v1145 = vmul.f32 %v789, 0.33333334
          %v1146 = vsub.f32 %v1140, %v1145
          %v1147 = vmul.f32 %v1146, 0.01
          %v1148 = vadd.f32 %v410, %v1147
          %v1149 = vmul.f32 %v412, 0.33333334
          %v1150 = vsub.f32 %v802, %v1149
          %v1151 = vmul.f32 %v1150, 0.01
          %v1152 = vadd.f32 %v411, %v1151
          %v1153 = vmul.f32 %v793, 0.33333334
          %v1154 = vsub.f32 %v1144, %v1153
          %v1155 = vmul.f32 %v1154, 0.01
          %v1156 = vadd.f32 %v412, %v1155
          %v1157 = vand.u32 2147483647, %v1148
          %vm1158 = vcmp.le.f32.partialorder %v1157, 0.7853982
          %vm1159 = vcmp.lt.s32.totalorder %v1148, 0
          %v1160 = vand.u32 %v1148, 2139095040
          %v1161 = vshrl.u32 %v1160, 23
          %v1162 = vsub.s32 %v1161, 127
          %v1163 = vand.u32 2147483647, %v1148
          %v1164 = vand.u32 %v1163, 8388607
          %v1165 = vor.u32 %v1164, 8388608
          %v1166 = vsub.s32 0, %v1165
          %v1167 = vadd.s32 %v1162, 1
          %vm1168 = vcmp.gt.s32.totalorder %v1167, 0
          %v1169 = vsel %vm1168, %v1167, 0
          %v1170 = vshrl.u32 %v1169, 5
          %v1171 = vand.u32 %v1169, 31
          %v1172 = vsub.s32 32, %v1171
          %v1173 = vshrl.u32 683565275, %v1172
          %v1174 = vshll.u32 683565275, %v1171
          %v1175 = vshrl.u32 2475754826, %v1172
          %v1176 = vor.u32 %v1174, %v1175
          %v1177 = vshll.u32 2475754826, %v1171
          %v1178 = vshrl.u32 2131351028, %v1172
          %v1179 = vor.u32 %v1177, %v1178
          %v1180 = vshll.u32 2131351028, %v1171
          %v1181 = vshrl.u32 2102212464, %v1172
          %v1182 = vor.u32 %v1180, %v1181
          %v1183 = vshll.u32 2102212464, %v1171
          %v1184 = vshrl.u32 920167782, %v1172
          %v1185 = vor.u32 %v1183, %v1184
          %v1186 = vshll.u32 920167782, %v1171
          %v1187 = vshrl.u32 1326507024, %v1172
          %v1188 = vor.u32 %v1186, %v1187
          %vm1189 = vcmp.lt.s32.totalorder %v1170, 1
          %vm1190 = vcmp.lt.s32.totalorder %v1170, 2
          %vm1191 = vcmp.lt.s32.totalorder %v1170, 3
          %vm1192 = vcmp.lt.s32.totalorder %v1170, 4
          %v1193 = vsel %vm1189, %v1173, %v1176
          %v1194 = vsel %vm1192, %v1182, 2102212464
          %v1195 = vsel %vm1191, %v1179, %v1194
          %v1196 = vsel %vm1190, %v1193, %v1195
          %v1197 = vsel %vm1189, %v1176, %v1179
          %v1198 = vsel %vm1192, %v1185, 920167782
          %v1199 = vsel %vm1191, %v1182, %v1198
          %v1200 = vsel %vm1190, %v1197, %v1199
          %v1201 = vsel %vm1189, %v1179, %v1182
          %v1202 = vsel %vm1192, %v1188, 1326507024
          %v1203 = vsel %vm1191, %v1185, %v1202
          %v1204 = vsel %vm1190, %v1201, %v1203
          %v1205 = vshll.u32 %v1165, 8
          %v1206 = vand.u32 %v1205, 65535
          %v1207 = vshrl.u32 %v1205, 16
          %v1208 = vand.u32 %v1204, 65535
          %v1209 = vshrl.u32 %v1204, 16
          %v1210 = vmul.u32 %v1206, %v1208
          %v1211 = vmul.u32 %v1206, %v1209
          %v1212 = vmul.u32 %v1207, %v1208
          %v1213 = vmul.u32 %v1207, %v1209
          %v1214 = vshll.u32 %v1211, 16
          %v1215 = vshrl.u32 %v1211, 16
          %v1216 = vshll.u32 %v1212, 16
          %v1217 = vshrl.u32 %v1212, 16
          %vm1218 = vc.u32 %v1210, %v1214
          %v1219 = vsel %vm1218, 1, 0
          %v1220 = vadd.s32 %v1210, %v1214
          %v1221 = vadd.s32 %v1213, %v1219
          %vm1222 = vc.u32 %v1220, %v1216
          %v1223 = vsel %vm1222, 1, 0
          %v1224 = vadd.s32 %v1220, %v1216
          %v1225 = vadd.s32 %v1221, %v1223
          %v1226 = vadd.s32 %v1225, %v1215
          %v1227 = vadd.s32 %v1226, %v1217
          %v1228 = vand.u32 %v1205, 65535
          %v1229 = vshrl.u32 %v1205, 16
          %v1230 = vand.u32 %v1200, 65535
          %v1231 = vshrl.u32 %v1200, 16
          %v1232 = vmul.u32 %v1228, %v1230
          %v1233 = vmul.u32 %v1228, %v1231
          %v1234 = vmul.u32 %v1229, %v1230
          %v1235 = vmul.u32 %v1229, %v1231
          %v1236 = vshll.u32 %v1233, 16
          %v1237 = vshrl.u32 %v1233, 16
          %v1238 = vshll.u32 %v1234, 16
          %v1239 = vshrl.u32 %v1234, 16
          %vm1240 = vc.u32 %v1232, %v1236
          %v1241 = vsel %vm1240, 1, 0
          %v1242 = vadd.s32 %v1232, %v1236
          %v1243 = vadd.s32 %v1235, %v1241
          %vm1244 = vc.u32 %v1242, %v1238
          %v1245 = vsel %vm1244, 1, 0
          %v1246 = vadd.s32 %v1242, %v1238
          %v1247 = vadd.s32 %v1243, %v1245
          %v1248 = vadd.s32 %v1247, %v1237
          %v1249 = vadd.s32 %v1248, %v1239
          %v1250 = vmul.u32 %v1205, %v1196
          %v1251 = vadd.s32 %v1227, %v1246
          %vm1252 = vc.u32 %v1227, %v1246
          %v1253 = vadd.s32 %v1249, 1
          %v1254 = vsel %vm1252, %v1253, %v1249
          %v1255 = vadd.s32 %v1250, %v1254
          %v1256 = vadd.s32 %v1255, 536870912
          %v1257 = vshrl.u32 %v1256, 30
          %v1258 = vshll.u32 %v1257, 30
          %v1259 = vsub.s32 %v1255, %v1258
          %vm1260 = vcmp.lt.s32.totalorder %v1259, 0
          %v1261 = vsub.s32 0, %v1259
          %v1262 = vsel %vm1260, %v1261, %v1259
          %v1263 = vclz %v1262
          %v1264 = vsub.s32 %v1263, 2
          %vm1265 = vcmp.gt.s32.totalorder 0, %v1264
          %v1266 = vsel %vm1265, 0, %v1264
          %v1267 = vsub.s32 32, %v1266
          %v1268 = vshll.u32 %v1259, %v1266
          %v1269 = vshrl.u32 %v1251, %v1267
          %v1270 = vor.u32 %v1268, %v1269
          %v1271 = vsub.s32 4294967266, %v1266
          %v1272 = vadd.s32 %v1271, 127
          %v1273 = vshll.u32 %v1272, 23
          %v1274 = vor.u32 4788187, %v1273
          %v1275 = vand.u32 2147483647, %v1274
          %v1277 = vcvt.s32.f32 %v1270
          %v1278 = vmul.f32 %v1277, %v1275
          %v1279 = vxor.u32 %v1278, 2147483648
          %v1280 = vsel %vm1159, %v1279, %v1278
          %v1281 = vsub.s32 4, %v1257
          %v1282 = vsel %vm1159, %v1281, %v1257
          %v1283 = vsel %vm1158, %v1148, %v1280
          %v1284 = vsel %vm1158, 0, %v1282
          %v1285 = vmul.f32 %v1283, %v1283
          %v1286 = vmul.f32 %v1285, -0.001358992
          %v1287 = vadd.f32 %v1286, 0.041655596
          %v1288 = vmul.f32 %v1285, %v1287
          %v1289 = vadd.f32 %v1288, -0.4999988
          %v1290 = vmul.f32 %v1285, %v1289
          %v1291 = vadd.f32 1.0, %v1290
          %v1292 = vmul.f32 %v1283, %v1283
          %v1293 = vmul.f32 %v1292, -0.00019511016
          %v1294 = vadd.f32 %v1293, 0.008332121
          %v1295 = vmul.f32 %v1292, %v1294
          %v1296 = vadd.f32 %v1295, -0.16666654
          %v1297 = vmul.f32 %v1292, %v1296
          %v1298 = vadd.f32 %v1297, 1.0
          %v1299 = vmul.f32 %v1298, %v1283
          %vm1300 = vweird.f32 %v1148
          %v1301 = vadd.s32 %v1284, 3
          %v1302 = vand.u32 %v1301, 3
          %vm1303 = vcmp.lt.s32.totalorder %v1302, 2
          %vm1304 = vcmp.eq.s32.totalorder %v1302, 0
          %v1305 = vxor.u32 %v1299, 2147483648
          %v1306 = vsel %vm1304, %v1291, %v1305
          %vm1307 = vcmp.eq.s32.totalorder %v1302, 2
          %v1308 = vxor.u32 %v1291, 2147483648
          %v1309 = vsel %vm1307, %v1308, %v1299
          %v1310 = vsel %vm1303, %v1306, %v1309
          %v1311 = vsel %vm1300, nan, %v1310
          %v1312 = vand.u32 2147483647, %v1148
          %vm1313 = vcmp.le.f32.partialorder %v1312, 0.7853982
          %vm1314 = vcmp.lt.s32.totalorder %v1148, 0
          %v1315 = vand.u32 %v1148, 2139095040
          %v1316 = vshrl.u32 %v1315, 23
          %v1317 = vsub.s32 %v1316, 127
          %v1318 = vand.u32 2147483647, %v1148
          %v1319 = vand.u32 %v1318, 8388607
          %v1320 = vor.u32 %v1319, 8388608
          %v1321 = vsub.s32 0, %v1320
          %v1322 = vadd.s32 %v1317, 1
          %vm1323 = vcmp.gt.s32.totalorder %v1322, 0
          %v1324 = vsel %vm1323, %v1322, 0
          %v1325 = vshrl.u32 %v1324, 5
          %v1326 = vand.u32 %v1324, 31
          %v1327 = vsub.s32 32, %v1326
          %v1328 = vshrl.u32 683565275, %v1327
          %v1329 = vshll.u32 683565275, %v1326
          %v1330 = vshrl.u32 2475754826, %v1327
          %v1331 = vor.u32 %v1329, %v1330
          %v1332 = vshll.u32 2475754826, %v1326
          %v1333 = vshrl.u32 2131351028, %v1327
          %v1334 = vor.u32 %v1332, %v1333
          %v1335 = vshll.u32 2131351028, %v1326
          %v1336 = vshrl.u32 2102212464, %v1327
          %v1337 = vor.u32 %v1335, %v1336
          %v1338 = vshll.u32 2102212464, %v1326
          %v1339 = vshrl.u32 920167782, %v1327
          %v1340 = vor.u32 %v1338, %v1339
          %v1341 = vshll.u32 920167782, %v1326
          %v1342 = vshrl.u32 1326507024, %v1327
          %v1343 = vor.u32 %v1341, %v1342
          %vm1344 = vcmp.lt.s32.totalorder %v1325, 1
          %vm1345 = vcmp.lt.s32.totalorder %v1325, 2
          %vm1346 = vcmp.lt.s32.totalorder %v1325, 3
          %vm1347 = vcmp.lt.s32.totalorder %v1325, 4
          %v1348 = vsel %vm1344, %v1328, %v1331
          %v1349 = vsel %vm1347, %v1337, 2102212464
          %v1350 = vsel %vm1346, %v1334, %v1349
          %v1351 = vsel %vm1345, %v1348, %v1350
          %v1352 = vsel %vm1344, %v1331, %v1334
          %v1353 = vsel %vm1347, %v1340, 920167782
          %v1354 = vsel %vm1346, %v1337, %v1353
          %v1355 = vsel %vm1345, %v1352, %v1354
          %v1356 = vsel %vm1344, %v1334, %v1337
          %v1357 = vsel %vm1347, %v1343, 1326507024
          %v1358 = vsel %vm1346, %v1340, %v1357
          %v1359 = vsel %vm1345, %v1356, %v1358
          %v1360 = vshll.u32 %v1320, 8
          %v1361 = vand.u32 %v1360, 65535
          %v1362 = vshrl.u32 %v1360, 16
          %v1363 = vand.u32 %v1359, 65535
          %v1364 = vshrl.u32 %v1359, 16
          %v1365 = vmul.u32 %v1361, %v1363
          %v1366 = vmul.u32 %v1361, %v1364
          %v1367 = vmul.u32 %v1362, %v1363
          %v1368 = vmul.u32 %v1362, %v1364
          %v1369 = vshll.u32 %v1366, 16
          %v1370 = vshrl.u32 %v1366, 16
          %v1371 = vshll.u32 %v1367, 16
          %v1372 = vshrl.u32 %v1367, 16
          %vm1373 = vc.u32 %v1365, %v1369
          %v1374 = vsel %vm1373, 1, 0
          %v1375 = vadd.s32 %v1365, %v1369
          %v1376 = vadd.s32 %v1368, %v1374
          %vm1377 = vc.u32 %v1375, %v1371
          %v1378 = vsel %vm1377, 1, 0
          %v1379 = vadd.s32 %v1375, %v1371
          %v1380 = vadd.s32 %v1376, %v1378
          %v1381 = vadd.s32 %v1380, %v1370
          %v1382 = vadd.s32 %v1381, %v1372
          %v1383 = vand.u32 %v1360, 65535
          %v1384 = vshrl.u32 %v1360, 16
          %v1385 = vand.u32 %v1355, 65535
          %v1386 = vshrl.u32 %v1355, 16
          %v1387 = vmul.u32 %v1383, %v1385
          %v1388 = vmul.u32 %v1383, %v1386
          %v1389 = vmul.u32 %v1384, %v1385
          %v1390 = vmul.u32 %v1384, %v1386
          %v1391 = vshll.u32 %v1388, 16
          %v1392 = vshrl.u32 %v1388, 16
          %v1393 = vshll.u32 %v1389, 16
          %v1394 = vshrl.u32 %v1389, 16
          %vm1395 = vc.u32 %v1387, %v1391
          %v1396 = vsel %vm1395, 1, 0
          %v1397 = vadd.s32 %v1387, %v1391
          %v1398 = vadd.s32 %v1390, %v1396
          %vm1399 = vc.u32 %v1397, %v1393
          %v1400 = vsel %vm1399, 1, 0
          %v1401 = vadd.s32 %v1397, %v1393
          %v1402 = vadd.s32 %v1398, %v1400
          %v1403 = vadd.s32 %v1402, %v1392
          %v1404 = vadd.s32 %v1403, %v1394
          %v1405 = vmul.u32 %v1360, %v1351
          %v1406 = vadd.s32 %v1382, %v1401
          %vm1407 = vc.u32 %v1382, %v1401
          %v1408 = vadd.s32 %v1404, 1
          %v1409 = vsel %vm1407, %v1408, %v1404
          %v1410 = vadd.s32 %v1405, %v1409
          %v1411 = vadd.s32 %v1410, 536870912
          %v1412 = vshrl.u32 %v1411, 30
          %v1413 = vshll.u32 %v1412, 30
          %v1414 = vsub.s32 %v1410, %v1413
          %vm1415 = vcmp.lt.s32.totalorder %v1414, 0
          %v1416 = vsub.s32 0, %v1414
          %v1417 = vsel %vm1415, %v1416, %v1414
          %v1418 = vclz %v1417
          %v1419 = vsub.s32 %v1418, 2
          %vm1420 = vcmp.gt.s32.totalorder 0, %v1419
          %v1421 = vsel %vm1420, 0, %v1419
          %v1422 = vsub.s32 32, %v1421
          %v1423 = vshll.u32 %v1414, %v1421
          %v1424 = vshrl.u32 %v1406, %v1422
          %v1425 = vor.u32 %v1423, %v1424
          %v1426 = vsub.s32 4294967266, %v1421
          %v1427 = vadd.s32 %v1426, 127
          %v1428 = vshll.u32 %v1427, 23
          %v1429 = vor.u32 4788187, %v1428
          %v1430 = vand.u32 2147483647, %v1429
          %v1432 = vcvt.s32.f32 %v1425
          %v1433 = vmul.f32 %v1432, %v1430
          %v1434 = vxor.u32 %v1433, 2147483648
          %v1435 = vsel %vm1314, %v1434, %v1433
          %v1436 = vsub.s32 4, %v1412
          %v1437 = vsel %vm1314, %v1436, %v1412
          %v1438 = vsel %vm1313, %v1148, %v1435
          %v1439 = vsel %vm1313, 0, %v1437
          %v1440 = vmul.f32 %v1438, %v1438
          %v1441 = vmul.f32 %v1440, -0.001358992
          %v1442 = vadd.f32 %v1441, 0.041655596
          %v1443 = vmul.f32 %v1440, %v1442
          %v1444 = vadd.f32 %v1443, -0.4999988
          %v1445 = vmul.f32 %v1440, %v1444
          %v1446 = vadd.f32 1.0, %v1445
          %v1447 = vmul.f32 %v1438, %v1438
          %v1448 = vmul.f32 %v1447, -0.00019511016
          %v1449 = vadd.f32 %v1448, 0.008332121
          %v1450 = vmul.f32 %v1447, %v1449
          %v1451 = vadd.f32 %v1450, -0.16666654
          %v1452 = vmul.f32 %v1447, %v1451
          %v1453 = vadd.f32 %v1452, 1.0
          %v1454 = vmul.f32 %v1453, %v1438
          %vm1455 = vweird.f32 %v1148
          %v1456 = vand.u32 %v1439, 3
          %vm1457 = vcmp.lt.s32.totalorder %v1456, 2
          %vm1458 = vcmp.eq.s32.totalorder %v1456, 0
          %v1459 = vxor.u32 %v1454, 2147483648
          %v1460 = vsel %vm1458, %v1446, %v1459
          %vm1461 = vcmp.eq.s32.totalorder %v1456, 2
          %v1462 = vxor.u32 %v1446, 2147483648
          %v1463 = vsel %vm1461, %v1462, %v1454
          %v1464 = vsel %vm1457, %v1460, %v1463
          %v1465 = vsel %vm1455, nan, %v1464
          %v1466 = vmul.f32 %v1152, %v1311
          %v1467 = vmul.f32 %v1152, %v1465
          %1468 = vmatpush.msra.mxu0 0.0
          %1469 = vmatpush.msra.mxu0 0.0
          %1470 = vmatpush.msra.mxu0 0.0
          %1471 = vmatpush.msra.mxu0 0.0
          %1472 = vmatpush.msra.mxu0 0.0
          %1473 = vmatpush.msra.mxu0 0.0
          %1474 = vmatpush.msra.mxu0 0.0
          %1475 = vmatpush.msra.mxu0 0.0
          %1476 = vmatpush.msra.mxu0 0.0
          %1477 = vmatpush.msra.mxu0 0.0
          %1478 = vmatpush.msra.mxu0 0.0
          %1479 = vmatpush.msra.mxu0 0.0
          %1480 = vmatpush.msra.mxu0 0.0
          %1481 = vmatpush.msra.mxu0 0.0
          %1482 = vmatpush.msra.mxu0 %v1467
          %1483 = vmatpush.msra.mxu0 %v1466
          %1484 = vmatmul.f32.gmra.mxu0 %v758
          %v1485 = vpop.f32.mrf.mxu0
          %v1486 = vadd.f32 0.0, %v1485
          %1487 = vmatmul.f32.gmra.mxu0 %v761
          %v1488 = vpop.f32.mrf.mxu0
          %v1489 = vadd.f32 0.0, %v1488
          %1490 = vdwg.mxu0
          %v1491 = vmul.f32 %v1465, %v1486
          %v1492 = vmul.f32 %v1311, %v1489
          %v1493 = vsub.f32 %v1491, %v1492
          %v1494 = vadd.f32 %v443, %v1493
          %v1495 = vmul.f32 %v391, %v1152
          %v1496 = vsub.f32 %v444, %v1495
          %v1497 = vmul.f32 %v385, %v1156
          %v1498 = vsub.f32 %v1496, %v1497
          %v1499 = vsub.f32 %v789, %v1140
          %v1500 = vadd.f32 %v1499, %v1494
          %v1501 = vmul.f32 %v1500, 0.01
          %v1502 = vadd.f32 %v410, %v1501
          %v1503 = vsub.f32 %v412, %v802
          %v1504 = vadd.f32 %v1503, %v1156
          %v1505 = vmul.f32 %v1504, 0.01
          %v1506 = vadd.f32 %v411, %v1505
          %v1507 = vsub.f32 %v793, %v1144
          %v1508 = vadd.f32 %v1507, %v1498
          %v1509 = vmul.f32 %v1508, 0.01
          %v1510 = vadd.f32 %v412, %v1509
          %v1511 = vand.u32 2147483647, %v1502
          %vm1512 = vcmp.le.f32.partialorder %v1511, 0.7853982
          %vm1513 = vcmp.lt.s32.totalorder %v1502, 0
          %v1514 = vand.u32 %v1502, 2139095040
          %v1515 = vshrl.u32 %v1514, 23
          %v1516 = vsub.s32 %v1515, 127
          %v1517 = vand.u32 2147483647, %v1502
          %v1518 = vand.u32 %v1517, 8388607
          %v1519 = vor.u32 %v1518, 8388608
          %v1520 = vsub.s32 0, %v1519
          %v1521 = vadd.s32 %v1516, 1
          %vm1522 = vcmp.gt.s32.totalorder %v1521, 0
          %v1523 = vsel %vm1522, %v1521, 0
          %v1524 = vshrl.u32 %v1523, 5
          %v1525 = vand.u32 %v1523, 31
          %v1526 = vsub.s32 32, %v1525
          %v1527 = vshrl.u32 683565275, %v1526
          %v1528 = vshll.u32 683565275, %v1525
          %v1529 = vshrl.u32 2475754826, %v1526
          %v1530 = vor.u32 %v1528, %v1529
          %v1531 = vshll.u32 2475754826, %v1525
          %v1532 = vshrl.u32 2131351028, %v1526
          %v1533 = vor.u32 %v1531, %v1532
          %v1534 = vshll.u32 2131351028, %v1525
          %v1535 = vshrl.u32 2102212464, %v1526
          %v1536 = vor.u32 %v1534, %v1535
          %v1537 = vshll.u32 2102212464, %v1525
          %v1538 = vshrl.u32 920167782, %v1526
          %v1539 = vor.u32 %v1537, %v1538
          %v1540 = vshll.u32 920167782, %v1525
          %v1541 = vshrl.u32 1326507024, %v1526
          %v1542 = vor.u32 %v1540, %v1541
          %vm1543 = vcmp.lt.s32.totalorder %v1524, 1
          %vm1544 = vcmp.lt.s32.totalorder %v1524, 2
          %vm1545 = vcmp.lt.s32.totalorder %v1524, 3
          %vm1546 = vcmp.lt.s32.totalorder %v1524, 4
          %v1547 = vsel %vm1543, %v1527, %v1530
          %v1548 = vsel %vm1546, %v1536, 2102212464
          %v1549 = vsel %vm1545, %v1533, %v1548
          %v1550 = vsel %vm1544, %v1547, %v1549
          %v1551 = vsel %vm1543, %v1530, %v1533
          %v1552 = vsel %vm1546, %v1539, 920167782
          %v1553 = vsel %vm1545, %v1536, %v1552
          %v1554 = vsel %vm1544, %v1551, %v1553
          %v1555 = vsel %vm1543, %v1533, %v1536
          %v1556 = vsel %vm1546, %v1542, 1326507024
          %v1557 = vsel %vm1545, %v1539, %v1556
          %v1558 = vsel %vm1544, %v1555, %v1557
          %v1559 = vshll.u32 %v1519, 8
          %v1560 = vand.u32 %v1559, 65535
          %v1561 = vshrl.u32 %v1559, 16
          %v1562 = vand.u32 %v1558, 65535
          %v1563 = vshrl.u32 %v1558, 16
          %v1564 = vmul.u32 %v1560, %v1562
          %v1565 = vmul.u32 %v1560, %v1563
          %v1566 = vmul.u32 %v1561, %v1562
          %v1567 = vmul.u32 %v1561, %v1563
          %v1568 = vshll.u32 %v1565, 16
          %v1569 = vshrl.u32 %v1565, 16
          %v1570 = vshll.u32 %v1566, 16
          %v1571 = vshrl.u32 %v1566, 16
          %vm1572 = vc.u32 %v1564, %v1568
          %v1573 = vsel %vm1572, 1, 0
          %v1574 = vadd.s32 %v1564, %v1568
          %v1575 = vadd.s32 %v1567, %v1573
          %vm1576 = vc.u32 %v1574, %v1570
          %v1577 = vsel %vm1576, 1, 0
          %v1578 = vadd.s32 %v1574, %v1570
          %v1579 = vadd.s32 %v1575, %v1577
          %v1580 = vadd.s32 %v1579, %v1569
          %v1581 = vadd.s32 %v1580, %v1571
          %v1582 = vand.u32 %v1559, 65535
          %v1583 = vshrl.u32 %v1559, 16
          %v1584 = vand.u32 %v1554, 65535
          %v1585 = vshrl.u32 %v1554, 16
          %v1586 = vmul.u32 %v1582, %v1584
          %v1587 = vmul.u32 %v1582, %v1585
          %v1588 = vmul.u32 %v1583, %v1584
          %v1589 = vmul.u32 %v1583, %v1585
          %v1590 = vshll.u32 %v1587, 16
          %v1591 = vshrl.u32 %v1587, 16
          %v1592 = vshll.u32 %v1588, 16
          %v1593 = vshrl.u32 %v1588, 16
          %vm1594 = vc.u32 %v1586, %v1590
          %v1595 = vsel %vm1594, 1, 0
          %v1596 = vadd.s32 %v1586, %v1590
          %v1597 = vadd.s32 %v1589, %v1595
          %vm1598 = vc.u32 %v1596, %v1592
          %v1599 = vsel %vm1598, 1, 0
          %v1600 = vadd.s32 %v1596, %v1592
          %v1601 = vadd.s32 %v1597, %v1599
          %v1602 = vadd.s32 %v1601, %v1591
          %v1603 = vadd.s32 %v1602, %v1593
          %v1604 = vmul.u32 %v1559, %v1550
          %v1605 = vadd.s32 %v1581, %v1600
          %vm1606 = vc.u32 %v1581, %v1600
          %v1607 = vadd.s32 %v1603, 1
          %v1608 = vsel %vm1606, %v1607, %v1603
          %v1609 = vadd.s32 %v1604, %v1608
          %v1610 = vadd.s32 %v1609, 536870912
          %v1611 = vshrl.u32 %v1610, 30
          %v1612 = vshll.u32 %v1611, 30
          %v1613 = vsub.s32 %v1609, %v1612
          %vm1614 = vcmp.lt.s32.totalorder %v1613, 0
          %v1615 = vsub.s32 0, %v1613
          %v1616 = vsel %vm1614, %v1615, %v1613
          %v1617 = vclz %v1616
          %v1618 = vsub.s32 %v1617, 2
          %vm1619 = vcmp.gt.s32.totalorder 0, %v1618
          %v1620 = vsel %vm1619, 0, %v1618
          %v1621 = vsub.s32 32, %v1620
          %v1622 = vshll.u32 %v1613, %v1620
          %v1623 = vshrl.u32 %v1605, %v1621
          %v1624 = vor.u32 %v1622, %v1623
          %v1625 = vsub.s32 4294967266, %v1620
          %v1626 = vadd.s32 %v1625, 127
          %v1627 = vshll.u32 %v1626, 23
          %v1628 = vor.u32 4788187, %v1627
          %v1629 = vand.u32 2147483647, %v1628
          %v1631 = vcvt.s32.f32 %v1624
          %v1632 = vmul.f32 %v1631, %v1629
          %v1633 = vxor.u32 %v1632, 2147483648
          %v1634 = vsel %vm1513, %v1633, %v1632
          %v1635 = vsub.s32 4, %v1611
          %v1636 = vsel %vm1513, %v1635, %v1611
          %v1637 = vsel %vm1512, %v1502, %v1634
          %v1638 = vsel %vm1512, 0, %v1636
          %v1639 = vmul.f32 %v1637, %v1637
          %v1640 = vmul.f32 %v1639, -0.001358992
          %v1641 = vadd.f32 %v1640, 0.041655596
          %v1642 = vmul.f32 %v1639, %v1641
          %v1643 = vadd.f32 %v1642, -0.4999988
          %v1644 = vmul.f32 %v1639, %v1643
          %v1645 = vadd.f32 1.0, %v1644
          %v1646 = vmul.f32 %v1637, %v1637
          %v1647 = vmul.f32 %v1646, -0.00019511016
          %v1648 = vadd.f32 %v1647, 0.008332121
          %v1649 = vmul.f32 %v1646, %v1648
          %v1650 = vadd.f32 %v1649, -0.16666654
          %v1651 = vmul.f32 %v1646, %v1650
          %v1652 = vadd.f32 %v1651, 1.0
          %v1653 = vmul.f32 %v1652, %v1637
          %vm1654 = vweird.f32 %v1502
          %v1655 = vadd.s32 %v1638, 3
          %v1656 = vand.u32 %v1655, 3
          %vm1657 = vcmp.lt.s32.totalorder %v1656, 2
          %vm1658 = vcmp.eq.s32.totalorder %v1656, 0
          %v1659 = vxor.u32 %v1653, 2147483648
          %v1660 = vsel %vm1658, %v1645, %v1659
          %vm1661 = vcmp.eq.s32.totalorder %v1656, 2
          %v1662 = vxor.u32 %v1645, 2147483648
          %v1663 = vsel %vm1661, %v1662, %v1653
          %v1664 = vsel %vm1657, %v1660, %v1663
          %v1665 = vsel %vm1654, nan, %v1664
          %v1666 = vand.u32 2147483647, %v1502
          %vm1667 = vcmp.le.f32.partialorder %v1666, 0.7853982
          %vm1668 = vcmp.lt.s32.totalorder %v1502, 0
          %v1669 = vand.u32 %v1502, 2139095040
          %v1670 = vshrl.u32 %v1669, 23
          %v1671 = vsub.s32 %v1670, 127
          %v1672 = vand.u32 2147483647, %v1502
          %v1673 = vand.u32 %v1672, 8388607
          %v1674 = vor.u32 %v1673, 8388608
          %v1675 = vsub.s32 0, %v1674
          %v1676 = vadd.s32 %v1671, 1
          %vm1677 = vcmp.gt.s32.totalorder %v1676, 0
          %v1678 = vsel %vm1677, %v1676, 0
          %v1679 = vshrl.u32 %v1678, 5
          %v1680 = vand.u32 %v1678, 31
          %v1681 = vsub.s32 32, %v1680
          %v1682 = vshrl.u32 683565275, %v1681
          %v1683 = vshll.u32 683565275, %v1680
          %v1684 = vshrl.u32 2475754826, %v1681
          %v1685 = vor.u32 %v1683, %v1684
          %v1686 = vshll.u32 2475754826, %v1680
          %v1687 = vshrl.u32 2131351028, %v1681
          %v1688 = vor.u32 %v1686, %v1687
          %v1689 = vshll.u32 2131351028, %v1680
          %v1690 = vshrl.u32 2102212464, %v1681
          %v1691 = vor.u32 %v1689, %v1690
          %v1692 = vshll.u32 2102212464, %v1680
          %v1693 = vshrl.u32 920167782, %v1681
          %v1694 = vor.u32 %v1692, %v1693
          %v1695 = vshll.u32 920167782, %v1680
          %v1696 = vshrl.u32 1326507024, %v1681
          %v1697 = vor.u32 %v1695, %v1696
          %vm1698 = vcmp.lt.s32.totalorder %v1679, 1
          %vm1699 = vcmp.lt.s32.totalorder %v1679, 2
          %vm1700 = vcmp.lt.s32.totalorder %v1679, 3
          %vm1701 = vcmp.lt.s32.totalorder %v1679, 4
          %v1702 = vsel %vm1698, %v1682, %v1685
          %v1703 = vsel %vm1701, %v1691, 2102212464
          %v1704 = vsel %vm1700, %v1688, %v1703
          %v1705 = vsel %vm1699, %v1702, %v1704
          %v1706 = vsel %vm1698, %v1685, %v1688
          %v1707 = vsel %vm1701, %v1694, 920167782
          %v1708 = vsel %vm1700, %v1691, %v1707
          %v1709 = vsel %vm1699, %v1706, %v1708
          %v1710 = vsel %vm1698, %v1688, %v1691
          %v1711 = vsel %vm1701, %v1697, 1326507024
          %v1712 = vsel %vm1700, %v1694, %v1711
          %v1713 = vsel %vm1699, %v1710, %v1712
          %v1714 = vshll.u32 %v1674, 8
          %v1715 = vand.u32 %v1714, 65535
          %v1716 = vshrl.u32 %v1714, 16
          %v1717 = vand.u32 %v1713, 65535
          %v1718 = vshrl.u32 %v1713, 16
          %v1719 = vmul.u32 %v1715, %v1717
          %v1720 = vmul.u32 %v1715, %v1718
          %v1721 = vmul.u32 %v1716, %v1717
          %v1722 = vmul.u32 %v1716, %v1718
          %v1723 = vshll.u32 %v1720, 16
          %v1724 = vshrl.u32 %v1720, 16
          %v1725 = vshll.u32 %v1721, 16
          %v1726 = vshrl.u32 %v1721, 16
          %vm1727 = vc.u32 %v1719, %v1723
          %v1728 = vsel %vm1727, 1, 0
          %v1729 = vadd.s32 %v1719, %v1723
          %v1730 = vadd.s32 %v1722, %v1728
          %vm1731 = vc.u32 %v1729, %v1725
          %v1732 = vsel %vm1731, 1, 0
          %v1733 = vadd.s32 %v1729, %v1725
          %v1734 = vadd.s32 %v1730, %v1732
          %v1735 = vadd.s32 %v1734, %v1724
          %v1736 = vadd.s32 %v1735, %v1726
          %v1737 = vand.u32 %v1714, 65535
          %v1738 = vshrl.u32 %v1714, 16
          %v1739 = vand.u32 %v1709, 65535
          %v1740 = vshrl.u32 %v1709, 16
          %v1741 = vmul.u32 %v1737, %v1739
          %v1742 = vmul.u32 %v1737, %v1740
          %v1743 = vmul.u32 %v1738, %v1739
          %v1744 = vmul.u32 %v1738, %v1740
          %v1745 = vshll.u32 %v1742, 16
          %v1746 = vshrl.u32 %v1742, 16
          %v1747 = vshll.u32 %v1743, 16
          %v1748 = vshrl.u32 %v1743, 16
          %vm1749 = vc.u32 %v1741, %v1745
          %v1750 = vsel %vm1749, 1, 0
          %v1751 = vadd.s32 %v1741, %v1745
          %v1752 = vadd.s32 %v1744, %v1750
          %vm1753 = vc.u32 %v1751, %v1747
          %v1754 = vsel %vm1753, 1, 0
          %v1755 = vadd.s32 %v1751, %v1747
          %v1756 = vadd.s32 %v1752, %v1754
          %v1757 = vadd.s32 %v1756, %v1746
          %v1758 = vadd.s32 %v1757, %v1748
          %v1759 = vmul.u32 %v1714, %v1705
          %v1760 = vadd.s32 %v1736, %v1755
          %vm1761 = vc.u32 %v1736, %v1755
          %v1762 = vadd.s32 %v1758, 1
          %v1763 = vsel %vm1761, %v1762, %v1758
          %v1764 = vadd.s32 %v1759, %v1763
          %v1765 = vadd.s32 %v1764, 536870912
          %v1766 = vshrl.u32 %v1765, 30
          %v1767 = vshll.u32 %v1766, 30
          %v1768 = vsub.s32 %v1764, %v1767
          %vm1769 = vcmp.lt.s32.totalorder %v1768, 0
          %v1770 = vsub.s32 0, %v1768
          %v1771 = vsel %vm1769, %v1770, %v1768
          %v1772 = vclz %v1771
          %v1773 = vsub.s32 %v1772, 2
          %vm1774 = vcmp.gt.s32.totalorder 0, %v1773
          %v1775 = vsel %vm1774, 0, %v1773
          %v1776 = vsub.s32 32, %v1775
          %v1777 = vshll.u32 %v1768, %v1775
          %v1778 = vshrl.u32 %v1760, %v1776
          %v1779 = vor.u32 %v1777, %v1778
          %v1780 = vsub.s32 4294967266, %v1775
          %v1781 = vadd.s32 %v1780, 127
          %v1782 = vshll.u32 %v1781, 23
          %v1783 = vor.u32 4788187, %v1782
          %v1784 = vand.u32 2147483647, %v1783
          %v1786 = vcvt.s32.f32 %v1779
          %v1787 = vmul.f32 %v1786, %v1784
          %v1788 = vxor.u32 %v1787, 2147483648
          %v1789 = vsel %vm1668, %v1788, %v1787
          %v1790 = vsub.s32 4, %v1766
          %v1791 = vsel %vm1668, %v1790, %v1766
          %v1792 = vsel %vm1667, %v1502, %v1789
          %v1793 = vsel %vm1667, 0, %v1791
          %v1794 = vmul.f32 %v1792, %v1792
          %v1795 = vmul.f32 %v1794, -0.001358992
          %v1796 = vadd.f32 %v1795, 0.041655596
          %v1797 = vmul.f32 %v1794, %v1796
          %v1798 = vadd.f32 %v1797, -0.4999988
          %v1799 = vmul.f32 %v1794, %v1798
          %v1800 = vadd.f32 1.0, %v1799
          %v1801 = vmul.f32 %v1792, %v1792
          %v1802 = vmul.f32 %v1801, -0.00019511016
          %v1803 = vadd.f32 %v1802, 0.008332121
          %v1804 = vmul.f32 %v1801, %v1803
          %v1805 = vadd.f32 %v1804, -0.16666654
          %v1806 = vmul.f32 %v1801, %v1805
          %v1807 = vadd.f32 %v1806, 1.0
          %v1808 = vmul.f32 %v1807, %v1792
          %vm1809 = vweird.f32 %v1502
          %v1810 = vand.u32 %v1793, 3
          %vm1811 = vcmp.lt.s32.totalorder %v1810, 2
          %vm1812 = vcmp.eq.s32.totalorder %v1810, 0
          %v1813 = vxor.u32 %v1808, 2147483648
          %v1814 = vsel %vm1812, %v1800, %v1813
          %vm1815 = vcmp.eq.s32.totalorder %v1810, 2
          %v1816 = vxor.u32 %v1800, 2147483648
          %v1817 = vsel %vm1815, %v1816, %v1808
          %v1818 = vsel %vm1811, %v1814, %v1817
          %v1819 = vsel %vm1809, nan, %v1818
          %v1820 = vmul.f32 %v1506, %v1665
          %v1821 = vmul.f32 %v1506, %v1819
          %1822 = vmatpush.msra.mxu0 0.0
          %1823 = vmatpush.msra.mxu0 0.0
          %1824 = vmatpush.msra.mxu0 0.0
          %1825 = vmatpush.msra.mxu0 0.0
          %1826 = vmatpush.msra.mxu0 0.0
          %1827 = vmatpush.msra.mxu0 0.0
          %1828 = vmatpush.msra.mxu0 0.0
          %1829 = vmatpush.msra.mxu0 0.0
          %1830 = vmatpush.msra.mxu0 0.0
          %1831 = vmatpush.msra.mxu0 0.0
          %1832 = vmatpush.msra.mxu0 0.0
          %1833 = vmatpush.msra.mxu0 0.0
          %1834 = vmatpush.msra.mxu0 0.0
          %1835 = vmatpush.msra.mxu0 0.0
          %1836 = vmatpush.msra.mxu0 %v1821
          %1837 = vmatpush.msra.mxu0 %v1820
          %1838 = vmatmul.f32.gmra.mxu0 %v758
          %v1839 = vpop.f32.mrf.mxu0
          %v1840 = vadd.f32 0.0, %v1839
          %1841 = vmatmul.f32.gmra.mxu0 %v761
          %v1842 = vpop.f32.mrf.mxu0
          %v1843 = vadd.f32 0.0, %v1842
          %1844 = vdwg.mxu0
          %v1845 = vmul.f32 %v1819, %v1840
          %v1846 = vmul.f32 %v1665, %v1843
          %v1847 = vsub.f32 %v1845, %v1846
          %v1848 = vadd.f32 %v443, %v1847
          %v1849 = vmul.f32 %v391, %v1506
          %v1850 = vsub.f32 %v444, %v1849
          %v1851 = vmul.f32 %v385, %v1510
          %v1852 = vsub.f32 %v1850, %v1851
          %v1853 = vadd.f32 %v1140, %v1494
          %v1854 = vmul.f32 %v1853, 3.0
          %v1855 = vadd.f32 %v789, %v1854
          %v1856 = vadd.f32 %v1855, %v1848
          %v1857 = vmul.f32 %v1856, 0.00125
          %v1858 = vadd.f32 %v410, %v1857
          %v1859 = vadd.f32 %v802, %v1156
          %v1860 = vmul.f32 %v1859, 3.0
          %v1861 = vadd.f32 %v412, %v1860
          %v1862 = vadd.f32 %v1861, %v1510
          %v1863 = vmul.f32 %v1862, 0.00125
          %v1864 = vadd.f32 %v411, %v1863
          %v1865 = vadd.f32 %v1144, %v1498
          %v1866 = vmul.f32 %v1865, 3.0
          %v1867 = vadd.f32 %v793, %v1866
          %v1868 = vadd.f32 %v1867, %v1852
          %v1869 = vmul.f32 %v1868, 0.00125
          %v1870 = vadd.f32 %v412, %v1869
          %s1871 = smul.addr %s403, 8
          %s1872 = scalar_lea.vmem %s346, %s1871 [#allocation3]
          %1873 = vst [vmem:[%s1872] sm:$0xff] %v1858
          %1874 = vst [vmem:[%s1872 + $0x10] sm:$0xff] %v1864
          %1875 = vst [vmem:[%s1872 + $0x20] sm:$0xff] %v1870
          %v1876 = vrot.slane %v1858, 4
          %v1877 = vmax.f32 %v1858, %v1876
          %v1878 = vrot.slane %v1877, 2
          %v1879 = vmax.f32 %v1877, %v1878
          %v1880 = vrot.slane %v1879, 1
          %v1881 = vmax.f32 %v1879, %v1880
          %v1882 = vmax.f32 %v399, %v1881
          %v1883 = vrot.slane %v1864, 4
          %v1884 = vmax.f32 %v1864, %v1883
          %v1885 = vrot.slane %v1884, 2
          %v1886 = vmax.f32 %v1884, %v1885
          %v1887 = vrot.slane %v1886, 1
          %v1888 = vmax.f32 %v1886, %v1887
          %v1889 = vmax.f32 %v400, %v1888
          %v1890 = vrot.slane %v1870, 4
          %v1891 = vmax.f32 %v1870, %v1890
          %v1892 = vrot.slane %v1891, 2
          %v1893 = vmax.f32 %v1891, %v1892
          %v1894 = vrot.slane %v1893, 1
          %v1895 = vmax.f32 %v1893, %v1894
          %v1896 = vmax.f32 %v401, %v1895
        $region76: #{cpg_actor_forward.1} parent=66 // loop_footer
          %s398 = sadd.s32 1, %s394
        $region77: #{cpg_actor_forward.1} parent=66 // loop_footer_branch
          %393 = sbr.rel target = $region73
        $region78: #{cpg_actor_forward.1} parent=66 // loop_exit
          _
        %v1897 = vlaneseq
        %v1898 = vshrl.u32 %v1897, 7
        %vm1899 = vcmp.eq.s32.totalorder %v1898, 0
        %vm1900 = vcmp.eq.s32.totalorder %v1898, 1
        %v1901 = vsel %vm1900, %v400, %v401
        %v1902 = vsel %vm1899, %v399, %v1901
        %1903 = vst [vmem:[%s364] sm:$0xff] %v1902
        %s1904 = sand.u32 %s185, 1
        %s1905 = sand.u32 %s185, 1
        %s1906 = smul.addr %s1905, 48
        %s1907 = scalar_lea.vmem [#allocation3], %s1906
        %p1908 = scmp.lt.s32.totalorder %s20, 2
        %s1909 = scalar_select %p1908, %s20, 2
        %s1910 = smul.addr %s1909, 8
        %s1911 = scalar_lea.vmem %s8, %s1910
        // Predicated region
        $region79: #{cpg_actor_forward.1} parent=66 // pred_check
          %p1912 = pneg %p195
        $region80: #{cpg_actor_forward.1} parent=66 // pred_check_branch
          %1914 = sbr.rel (%p1912) target = $region82
        $region81: #{cpg_actor_forward.1} parent=66 // pred_region
          %s1915 = smul.u32 2, %s20
          %s1916 = smul.addr %s1915, 8
          %s1917 = scalar_lea.vmem %s7, %s1916
          // Predicated region
          $region83: #{cpg_actor_forward.1} parent=81 // pred_check
            _
          $region84: #{cpg_actor_forward.1} parent=81 // pred_check_branch
            %1919 = sbr.rel (0) target = $region86
          $region85: #{cpg_actor_forward.1} parent=81 // pred_region
            // Predicated region
            $region87: #{cpg_actor_forward.1} parent=85 // pred_check
              _
            $region88: #{cpg_actor_forward.1} parent=85 // pred_check_branch
              %1921 = sbr.rel (0) target = $region90
            $region89: #{cpg_actor_forward.1} parent=85 // pred_region
              loop: start=0, step=1, limit=1
              $region91: #{cpg_actor_forward.1} parent=89 // loop_pre_header
                _
              $region92: #{cpg_actor_forward.1} parent=89 // loop_header
                %s1923 = sphi 0, %s1927
                %p1924 = scmp.ge.s32.totalorder %s1923, 1
                %s1928 = sphi %s1907, %s1907
                %s1929 = sphi %s1917, %s1917
              $region93: #{cpg_actor_forward.1} parent=89 // loop_header_branch
                %1926 = sbr.rel (%p1924) target = $region97
              $region94: #{cpg_actor_forward.1} parent=89 // loop_body
                %v1930 = vld [vmem:[%s1928] sm:$0xff]
                %1931 = vst [vmem:[%s1929] sm:$0xff] %v1930
                %v1932 = vld [vmem:[%s1928 + $0x8] sm:$0xff]
                %1933 = vst [vmem:[%s1929 + $0x8] sm:$0xff] %v1932
                %v1934 = vld [vmem:[%s1928 + $0x10] sm:$0xff]
                %1935 = vst [vmem:[%s1929 + $0x30] sm:$0xff] %v1934
                %v1936 = vld [vmem:[%s1928 + $0x18] sm:$0xff]
                %1937 = vst [vmem:[%s1929 + $0x38] sm:$0xff] %v1936
                %v1938 = vld [vmem:[%s1928 + $0x20] sm:$0xff]
                %1939 = vst [vmem:[%s1929 + $0x60] sm:$0xff] %v1938
                %v1940 = vld [vmem:[%s1928 + $0x28] sm:$0xff]
                %1941 = vst [vmem:[%s1929 + $0x68] sm:$0xff] %v1940
              $region95: #{cpg_actor_forward.1} parent=89 // loop_footer
                %s1927 = sadd.s32 1, %s1923
              $region96: #{cpg_actor_forward.1} parent=89 // loop_footer_branch
                %1922 = sbr.rel target = $region92
              $region97: #{cpg_actor_forward.1} parent=89 // loop_exit
                _
            $region90: #{cpg_actor_forward.1} parent=85 // pred_fallthru
              _
            // Predicated region
            $region98: #{cpg_actor_forward.1} parent=85 // pred_check
              _
            $region99: #{cpg_actor_forward.1} parent=85 // pred_check_branch
              %1943 = sbr.rel target = $region101
            $region100: #{cpg_actor_forward.1} parent=85 // pred_region
              _
            $region101: #{cpg_actor_forward.1} parent=85 // pred_fallthru
              _
          $region86: #{cpg_actor_forward.1} parent=81 // pred_fallthru
            _
          %1944 = vnop
        $region82: #{cpg_actor_forward.1} parent=66 // pred_fallthru
          _
        // Predicated region
        $region102: #{cpg_actor_forward.1} parent=66 // pred_check
          %p1945 = pneg %p221
        $region103: #{cpg_actor_forward.1} parent=66 // pred_check_branch
          %1947 = sbr.rel (%p1945) target = $region105
        $region104: #{cpg_actor_forward.1} parent=66 // pred_region
          _
        $region105: #{cpg_actor_forward.1} parent=66 // pred_fallthru
          _
      $region67: #{cpg_actor_forward.1} parent=5 // pred_fallthru
        _
      %p1948 = scmp.le.s32.totalorder 2, %s15
      // Predicated region
      $region106: #{cpg_actor_forward.1} parent=5 // pred_check
        %p1949 = pneg %p1948
      $region107: #{cpg_actor_forward.1} parent=5 // pred_check_branch
        %1951 = sbr.rel (%p1949) target = $region109
      $region108: #{cpg_actor_forward.1} parent=5 // pred_region
        %s1952 = ssub.s32 %s15, 2
        // Predicated region
        $region110: #{cpg_actor_forward.1} parent=108 // pred_check
          %p1953 = pneg %p201
        $region111: #{cpg_actor_forward.1} parent=108 // pred_check_branch
          %1955 = sbr.rel (%p1953) target = $region113
        $region112: #{cpg_actor_forward.1} parent=108 // pred_region
          %s1956 = sand.u32 %s186, 1
          %s1957 = sand.u32 %s186, 1
          %s1958 = smul.addr %s1957, 48
          %s1959 = scalar_lea.vmem [#allocation3], %s1958
        $region113: #{cpg_actor_forward.1} parent=108 // pred_fallthru
          _
        // Predicated region
        $region114: #{cpg_actor_forward.1} parent=108 // pred_check
          %p1960 = pneg %p227
        $region115: #{cpg_actor_forward.1} parent=108 // pred_check_branch
          %1962 = sbr.rel (%p1960) target = $region117
        $region116: #{cpg_actor_forward.1} parent=108 // pred_region
          %p1963 = scmp.lt.s32.totalorder %s21, 2
          %s1964 = scalar_select %p1963, %s21, 2
          %s1965 = smul.addr %s1964, 8
          %s1966 = scalar_lea.vmem %s8, %s1965
        $region117: #{cpg_actor_forward.1} parent=108 // pred_fallthru
          _
      $region109: #{cpg_actor_forward.1} parent=5 // pred_fallthru
        _
    $region6: #{cpg_actor_forward.1} parent=1 // loop_footer
      %s19 = sadd.s32 1, %s15
    $region7: #{cpg_actor_forward.1} parent=1 // loop_footer_branch
      %14 = sbr.rel target = $region3
    $region8: #{cpg_actor_forward.1} parent=1 // loop_exit
      _

</llo_original>
